<compile_context>
chip_gen: v7x
topology: tpu7x:2x2x1
jax: 0.10.0
libtpu: 0.0.40
codegen_flags: <defaults>
</compile_context>

<pallas_src>
import numpy as np
import jax
import jax.numpy as jnp
from jax.experimental import pallas as pl
from jax.experimental.pallas import tpu as pltpu

A_DIM = 6
S0, S1 = 6, 8                       # per-half state rows / cols
HID = 128                           # conv channels / small-linear width
K = 4                               # Conv1d kernel size
L5 = S1 - K + 1                     # 5  (conv length on 8-long rows)
L3 = A_DIM - K + 1                  # 3  (conv length on the 6-long slice)
FEAT_ROWS = 2 + L5 + L5 + L3 + 1    # 16 feature rows of 128 => 2048 features
FEAT = FEAT_ROWS * HID              # 2048
H3 = 128                            # Linear(2048, 128)
OUT = A_DIM                         # Linear(128, 6)
NCOEF = 16                          # stage-1 coefficient width (7 weights + 4 bias cols + pad)
TILE_M = 16                         # half-samples per grid step (multiple of 8)
VIDEO_SIZES = np.array([10., 20., 40., 80., 160., 320.], np.float32)


# ----------------------------------------------------------------------------- kernel
def actor_kernel(a_ref, w1_ref, w3_ref, b3_ref, w4_ref, b4_ref, vs_ref,
                 out_ref, feat_ref):
    T = out_ref.shape[0]                                   # half-samples in this tile

    # Stage 1: all small linears + convs + their biases as one MXU matmul.
    #   a_ref: (FEAT_ROWS*T, 16)   w1_ref: (16, 128)
    pre = jnp.dot(a_ref[...], w1_ref[...],
                  preferred_element_type=jnp.float32)      # (16*T, 128)
    act = jnp.maximum(pre, 0.0)

    # Scatter the 16 per-segment blocks into a lane-dense (T, 2048) feature slab.
    for r in range(FEAT_ROWS):
        blk = act if r < FEAT_ROWS - 1 else pre            # last segment (linear2): no ReLU
        feat_ref[:, r * HID:(r + 1) * HID] = blk[r * T:(r + 1) * T, :]

    # Stage 2: Linear(2048, 128) as a single K=2048 MXU contraction.
    h = jnp.dot(feat_ref[...], w3_ref[...],
                preferred_element_type=jnp.float32) + b3_ref[...]
    h = jnp.maximum(h, 0.0)                                # (T, 128)

    # Stage 3: Linear(128, 6) padded to 128 lanes (pad lanes stay exactly 0 after ReLU).
    logits = jnp.dot(h, w4_ref[...],
                     preferred_element_type=jnp.float32) + b4_ref[...]
    logits = jnp.maximum(logits, 0.0)                      # (T, 128)

    # Squared "softmax" + video-size weighting:  bitrate = sum(sq*vs) / sum(sq)
    sq = logits * logits
    deno = jnp.sum(sq, axis=1, keepdims=True)              # (T, 1)
    num = jnp.sum(sq * vs_ref[...], axis=1, keepdims=True) # (T, 1)
    out_ref[...] = num / deno


# ------------------------------------------------------------------- wrapper helpers
def _stage1_weight(p):
    """(16,128) stacked stage-1 weight: [wl0,wl1,wl2,wc0..wc3,bl0,bl1,bl2,bc,0...]."""
    w1 = jnp.zeros((NCOEF, HID), jnp.float32)
    w1 = w1.at[0].set(p["lin0_w"][:, 0])
    w1 = w1.at[1].set(p["lin1_w"][:, 0])
    w1 = w1.at[2].set(p["lin2_w"][:, 0])
    w1 = w1.at[3:3 + K].set(p["conv1_w"][:, 0, :].T)       # conv taps (4, 128)
    w1 = w1.at[7].set(p["lin0_b"])
    w1 = w1.at[8].set(p["lin1_b"])
    w1 = w1.at[9].set(p["lin2_b"])
    w1 = w1.at[10].set(p["conv1_b"])
    return w1


def _lin3_kernel_weight(w3):
    """Permute torch Linear(2048,128) weight (128,2048) to kernel feature order (2048,128).

    Torch concat index for (segment row r, channel c):
      r=0: c ; r=1: 128+c ; conv segments: base + c*L + t ; r=15: 1920+c.
    Kernel feature index: r*128 + c.
    """
    c = np.arange(HID)
    perm = np.empty((FEAT_ROWS, HID), np.int32)
    perm[0] = c
    perm[1] = HID + c
    base = 2 * HID
    for t in range(L5):
        perm[2 + t] = base + c * L5 + t
    base += HID * L5
    for t in range(L5):
        perm[2 + L5 + t] = base + c * L5 + t
    base += HID * L5
    for t in range(L3):
        perm[2 + 2 * L5 + t] = base + c * L3 + t
    base += HID * L3
    perm[FEAT_ROWS - 1] = base + c
    w3_t = jnp.asarray(w3, jnp.float32).T                  # (2048, 128), row = torch index
    return w3_t[perm.reshape(-1)]                          # (2048, 128), kernel order


def _build_coeffs(xh):
    """xh: (MP, 6, 8) -> stage-1 coefficient tensor (FEAT_ROWS, MP, NCOEF).

    Columns: 0..2 scalar picks for linear0/1/2, 3..6 im2col conv window,
             7..9 bias indicators for linear0/1/2, 10 conv-bias indicator.
    """
    MP = xh.shape[0]
    A = jnp.zeros((FEAT_ROWS, MP, NCOEF), jnp.float32)
    A = A.at[0, :, 0].set(xh[:, 0, S1 - 1])
    A = A.at[0, :, 7].set(1.0)
    A = A.at[1, :, 1].set(xh[:, 1, S1 - 1])
    A = A.at[1, :, 8].set(1.0)
    A = A.at[FEAT_ROWS - 1, :, 2].set(xh[:, 5, S1 - 1])
    A = A.at[FEAT_ROWS - 1, :, 9].set(1.0)
    for row, lout, base in ((2, L5, 2), (3, L5, 2 + L5), (4, L3, 2 + 2 * L5)):
        for t in range(lout):
            A = A.at[base + t, :, 3:3 + K].set(xh[:, row, t:t + K])
            A = A.at[base + t, :, 10].set(1.0)
    return A


# ------------------------------------------------------------------------- forward
@jax.jit
def actor_forward(x, params):
    x = jnp.asarray(x, jnp.float32).reshape(-1, 2 * S0, S1)          # (B, 12, 8)
    B = x.shape[0]
    halves = jnp.concatenate([x[:, :S0, :], x[:, S0:, :]], axis=0)   # (2B, 6, 8)
    M = 2 * B
    MP = ((M + TILE_M - 1) // TILE_M) * TILE_M
    if MP != M:
        halves = jnp.pad(halves, ((0, MP - M), (0, 0), (0, 0)))
    ntiles = MP // TILE_M

    # Stage-1 coefficients, tiled so each grid block is a contiguous (16*TILE_M, 16) slab.
    A = _build_coeffs(halves)                                        # (16, MP, 16)
    A = (A.reshape(FEAT_ROWS, ntiles, TILE_M, NCOEF)
           .transpose(1, 0, 2, 3)
           .reshape(ntiles * FEAT_ROWS * TILE_M, NCOEF))

    w1 = _stage1_weight(params)                                      # (16, 128)
    w3 = _lin3_kernel_weight(params["lin3_w"])                       # (2048, 128)
    b3 = params["lin3_b"].reshape(1, H3)
    w4 = jnp.zeros((H3, HID), jnp.float32).at[:, :OUT].set(params["lin4_w"].T)
    b4 = jnp.zeros((1, HID), jnp.float32).at[0, :OUT].set(params["lin4_b"])
    vs = jnp.zeros((1, HID), jnp.float32).at[0, :OUT].set(jnp.asarray(VIDEO_SIZES))

    const = lambda i: (0, 0)        # weights: same block every step -> DMA'd once, resident
    br = pl.pallas_call(
        actor_kernel,
        out_shape=jax.ShapeDtypeStruct((MP, 1), jnp.float32),
        grid=(ntiles,),
        in_specs=[
            pl.BlockSpec((FEAT_ROWS * TILE_M, NCOEF), lambda i: (i, 0)),
            pl.BlockSpec((NCOEF, HID), const),
            pl.BlockSpec((FEAT, H3), const),
            pl.BlockSpec((1, H3), const),
            pl.BlockSpec((H3, HID), const),
            pl.BlockSpec((1, HID), const),
            pl.BlockSpec((1, HID), const),
        ],
        out_specs=pl.BlockSpec((TILE_M, 1), lambda i: (i, 0)),
        scratch_shapes=[pltpu.VMEM((TILE_M, FEAT), jnp.float32)],
        compiler_params=pltpu.CompilerParams(dimension_semantics=("parallel",)),
    )(A, w1, w3, b3, w4, b4, vs)

    br = br[:M]                                                      # drop batch padding
    return br[:B] - br[B:]                                           # bit_rate1 - bit_rate2


# ------------------------------------------------------------------ reference + test
def init_params(key):
    """Deterministic synthetic parameters with PyTorch-native shapes."""
    ks = jax.random.split(key, 12)

    def u(k, shape, fan_in):
        b = 1.0 / np.sqrt(fan_in)
        return jax.random.uniform(k, shape, jnp.float32, -b, b)

    return dict(
        conv1_w=u(ks[0], (HID, 1, K), K), conv1_b=u(ks[1], (HID,), K),
        lin0_w=u(ks[2], (HID, 1), 1),     lin0_b=u(ks[3], (HID,), 1),
        lin1_w=u(ks[4], (HID, 1), 1),     lin1_b=u(ks[5], (HID,), 1),
        lin2_w=u(ks[6], (HID, 1), 1),     lin2_b=u(ks[7], (HID,), 1),
        lin3_w=u(ks[8], (H3, FEAT), FEAT), lin3_b=u(ks[9], (H3,), FEAT),
        lin4_w=u(ks[10], (OUT, H3), H3),
        # Positive lin4 bias keeps the squared-softmax denominator well conditioned for
        # the numerical check (the kernel handles arbitrary values exactly like torch).
        lin4_b=jax.random.uniform(ks[11], (OUT,), jnp.float32, 0.05, 0.15),
    )


@jax.jit
def ref_forward(x, p):
    """Pure-JAX replica of the PyTorch forward."""
    x = jnp.asarray(x, jnp.float32).reshape(-1, 2 * S0, S1)
    vs = jnp.asarray(VIDEO_SIZES).reshape(-1, 1)

    def head(xi):                                           # (B, 6, 8) -> (B, 1)
        s0 = jax.nn.relu(xi[:, 0, -1:] * p["lin0_w"][:, 0][None, :] + p["lin0_b"][None, :])
        s1 = jax.nn.relu(xi[:, 1, -1:] * p["lin1_w"][:, 0][None, :] + p["lin1_b"][None, :])
        s5 = xi[:, 5, -1:] * p["lin2_w"][:, 0][None, :] + p["lin2_b"][None, :]
        wc = p["conv1_w"][:, 0, :]                          # (128, 4)

        def conv(rows):                                     # (B, L) -> (B, 128*lout) channel-major
            lout = rows.shape[1] - K + 1
            win = jnp.stack([rows[:, t:t + K] for t in range(lout)], axis=1)   # (B, lout, 4)
            out = jnp.einsum("blk,ck->bcl", win, wc) + p["conv1_b"][None, :, None]
            return jax.nn.relu(out).reshape(out.shape[0], -1)

        c2 = conv(xi[:, 2, :])
        c3 = conv(xi[:, 3, :])
        c4 = conv(xi[:, 4, :A_DIM])
        feat = jnp.concatenate([s0, s1, c2, c3, c4, s5], axis=1)               # (B, 2048)
        h = jax.nn.relu(feat @ p["lin3_w"].T + p["lin3_b"][None, :])
        logits = jax.nn.relu(h @ p["lin4_w"].T + p["lin4_b"][None, :])         # (B, 6)
        sq = logits * logits
        dist = sq / jnp.sum(sq, axis=1, keepdims=True)
        return dist @ vs                                                       # (B, 1)

    return head(x[:, :S0, :]) - head(x[:, S0:, :])


if __name__ == "__main__":
    key = jax.random.PRNGKey(0)
    pkey, xkey = jax.random.split(key)
    params = init_params(pkey)

    B = 16                                                   # -> 32 half-samples, 2 grid steps
    x = jax.random.normal(xkey, (B, 2 * S0, S1), jnp.float32)

    out = jax.block_until_ready(actor_forward(x, params))
    assert out.shape == (B, 1) and out.dtype == jnp.float32

    ref = jax.block_until_ready(ref_forward(x, params))
    np.testing.assert_allclose(np.asarray(out), np.asarray(ref), rtol=5e-3, atol=1e-1)
    print("KERNEL_OK")
</pallas_src>

<mosaic_0001>
module attributes {stable_mosaic.version = 11 : i64} {
  func.func private @main(%arg0: i32) attributes {dimension_semantics = [#tpu.dimension_semantics<core_parallel>], iteration_bounds = array<i64: 2>, tpu.core_type = #tpu.core_type<sc_scalar_subcore>, window_params = []} {
    return
  }
}

module attributes {stable_mosaic.version = 11 : i64} {
  func.func private @main(%arg0: i32) attributes {dimension_semantics = [#tpu.dimension_semantics<core_parallel>], iteration_bounds = array<i64: 2>, tpu.core_type = #tpu.core_type<sc_scalar_subcore>, window_params = []} {
    return
  }
}

module attributes {stable_mosaic.version = 11 : i64} {
  func.func @actor_kernel(%arg0: i32, %arg1: memref<256x16xf32, #tpu.memory_space<vmem>>, %arg2: memref<16x128xf32, #tpu.memory_space<vmem>>, %arg3: memref<2048x128xf32, #tpu.memory_space<vmem>>, %arg4: memref<1x128xf32, #tpu.memory_space<vmem>>, %arg5: memref<128x128xf32, #tpu.memory_space<vmem>>, %arg6: memref<1x128xf32, #tpu.memory_space<vmem>>, %arg7: memref<1x128xf32, #tpu.memory_space<vmem>>, %arg8: memref<16x1xf32, #tpu.memory_space<vmem>>, %arg9: memref<16x2048xf32, #tpu.memory_space<vmem>>) attributes {dimension_semantics = [#tpu.dimension_semantics<parallel>], iteration_bounds = array<i64: 2>, scalar_prefetch = 0 : i64, scratch_operands = 1 : i64, tpu.core_type = #tpu.core_type<tc>, window_params = [{transform_indices = @transform_0, window_bounds = array<i64: 256, 16>}, {pipeline_mode = #tpu.pipeline_mode<synchronous>, transform_indices = @transform_1, window_bounds = array<i64: 16, 128>}, {pipeline_mode = #tpu.pipeline_mode<synchronous>, transform_indices = @transform_2, window_bounds = array<i64: 2048, 128>}, {pipeline_mode = #tpu.pipeline_mode<synchronous>, transform_indices = @transform_3, window_bounds = array<i64: 1, 128>}, {pipeline_mode = #tpu.pipeline_mode<synchronous>, transform_indices = @transform_4, window_bounds = array<i64: 128, 128>}, {pipeline_mode = #tpu.pipeline_mode<synchronous>, transform_indices = @transform_5, window_bounds = array<i64: 1, 128>}, {pipeline_mode = #tpu.pipeline_mode<synchronous>, transform_indices = @transform_6, window_bounds = array<i64: 1, 128>}, {transform_indices = @transform_7, window_bounds = array<i64: 16, 1>}]} {
    %c0 = arith.constant 0 : index
    %c0_0 = arith.constant 0 : index
    %0 = vector.load %arg1[%c0, %c0_0] : memref<256x16xf32, #tpu.memory_space<vmem>>, vector<256x16xf32>
    %c0_1 = arith.constant 0 : index
    %c0_2 = arith.constant 0 : index
    %1 = vector.load %arg2[%c0_1, %c0_2] : memref<16x128xf32, #tpu.memory_space<vmem>>, vector<16x128xf32>
    %cst = arith.constant dense<0.000000e+00> : vector<256x128xf32>
    %2 = tpu.matmul %0, %1, %cst {dimension_numbers = #tpu.dot_dimension_numbers<[1], [0], [0], [1], [0, 0, 1, 1], [], []>} : vector<256x16xf32>, vector<16x128xf32>, vector<256x128xf32> -> vector<256x128xf32>
    %cst_3 = arith.constant 0.000000e+00 : f32
    %3 = vector.broadcast %cst_3 : f32 to vector<256x128xf32>
    %4 = arith.maximumf %2, %3 : vector<256x128xf32>
    %5 = vector.extract_strided_slice %4 {offsets = [0, 0], sizes = [16, 128], strides = [1, 1]} : vector<256x128xf32> to vector<16x128xf32>
    %c0_4 = arith.constant 0 : index
    %c0_5 = arith.constant 0 : index
    %6 = vector.load %arg9[%c0_4, %c0_5] : memref<16x2048xf32, #tpu.memory_space<vmem>>, vector<16x128xf32>
    tpu.vector_store %arg9[%c0_4, %c0_5], %5 {strides = array<i32>} : memref<16x2048xf32, #tpu.memory_space<vmem>>, vector<16x128xf32>,
    %7 = vector.extract_strided_slice %4 {offsets = [16, 0], sizes = [16, 128], strides = [1, 1]} : vector<256x128xf32> to vector<16x128xf32>
    %c0_6 = arith.constant 0 : index
    %c128 = arith.constant 128 : index
    %8 = vector.load %arg9[%c0_6, %c128] : memref<16x2048xf32, #tpu.memory_space<vmem>>, vector<16x128xf32>
    tpu.vector_store %arg9[%c0_6, %c128], %7 {strides = array<i32>} : memref<16x2048xf32, #tpu.memory_space<vmem>>, vector<16x128xf32>,
    %9 = vector.extract_strided_slice %4 {offsets = [32, 0], sizes = [16, 128], strides = [1, 1]} : vector<256x128xf32> to vector<16x128xf32>
    %c0_7 = arith.constant 0 : index
    %c256 = arith.constant 256 : index
    %10 = vector.load %arg9[%c0_7, %c256] : memref<16x2048xf32, #tpu.memory_space<vmem>>, vector<16x128xf32>
    tpu.vector_store %arg9[%c0_7, %c256], %9 {strides = array<i32>} : memref<16x2048xf32, #tpu.memory_space<vmem>>, vector<16x128xf32>,
    %11 = vector.extract_strided_slice %4 {offsets = [48, 0], sizes = [16, 128], strides = [1, 1]} : vector<256x128xf32> to vector<16x128xf32>
    %c0_8 = arith.constant 0 : index
    %c384 = arith.constant 384 : index
    %12 = vector.load %arg9[%c0_8, %c384] : memref<16x2048xf32, #tpu.memory_space<vmem>>, vector<16x128xf32>
    tpu.vector_store %arg9[%c0_8, %c384], %11 {strides = array<i32>} : memref<16x2048xf32, #tpu.memory_space<vmem>>, vector<16x128xf32>,
    %13 = vector.extract_strided_slice %4 {offsets = [64, 0], sizes = [16, 128], strides = [1, 1]} : vector<256x128xf32> to vector<16x128xf32>
    %c0_9 = arith.constant 0 : index
    %c512 = arith.constant 512 : index
    %14 = vector.load %arg9[%c0_9, %c512] : memref<16x2048xf32, #tpu.memory_space<vmem>>, vector<16x128xf32>
    tpu.vector_store %arg9[%c0_9, %c512], %13 {strides = array<i32>} : memref<16x2048xf32, #tpu.memory_space<vmem>>, vector<16x128xf32>,
    %15 = vector.extract_strided_slice %4 {offsets = [80, 0], sizes = [16, 128], strides = [1, 1]} : vector<256x128xf32> to vector<16x128xf32>
    %c0_10 = arith.constant 0 : index
    %c640 = arith.constant 640 : index
    %16 = vector.load %arg9[%c0_10, %c640] : memref<16x2048xf32, #tpu.memory_space<vmem>>, vector<16x128xf32>
    tpu.vector_store %arg9[%c0_10, %c640], %15 {strides = array<i32>} : memref<16x2048xf32, #tpu.memory_space<vmem>>, vector<16x128xf32>,
    %17 = vector.extract_strided_slice %4 {offsets = [96, 0], sizes = [16, 128], strides = [1, 1]} : vector<256x128xf32> to vector<16x128xf32>
    %c0_11 = arith.constant 0 : index
    %c768 = arith.constant 768 : index
    %18 = vector.load %arg9[%c0_11, %c768] : memref<16x2048xf32, #tpu.memory_space<vmem>>, vector<16x128xf32>
    tpu.vector_store %arg9[%c0_11, %c768], %17 {strides = array<i32>} : memref<16x2048xf32, #tpu.memory_space<vmem>>, vector<16x128xf32>,
    %19 = vector.extract_strided_slice %4 {offsets = [112, 0], sizes = [16, 128], strides = [1, 1]} : vector<256x128xf32> to vector<16x128xf32>
    %c0_12 = arith.constant 0 : index
    %c896 = arith.constant 896 : index
    %20 = vector.load %arg9[%c0_12, %c896] : memref<16x2048xf32, #tpu.memory_space<vmem>>, vector<16x128xf32>
    tpu.vector_store %arg9[%c0_12, %c896], %19 {strides = array<i32>} : memref<16x2048xf32, #tpu.memory_space<vmem>>, vector<16x128xf32>,
    %21 = vector.extract_strided_slice %4 {offsets = [128, 0], sizes = [16, 128], strides = [1, 1]} : vector<256x128xf32> to vector<16x128xf32>
    %c0_13 = arith.constant 0 : index
    %c1024 = arith.constant 1024 : index
    %22 = vector.load %arg9[%c0_13, %c1024] : memref<16x2048xf32, #tpu.memory_space<vmem>>, vector<16x128xf32>
    tpu.vector_store %arg9[%c0_13, %c1024], %21 {strides = array<i32>} : memref<16x2048xf32, #tpu.memory_space<vmem>>, vector<16x128xf32>,
    %23 = vector.extract_strided_slice %4 {offsets = [144, 0], sizes = [16, 128], strides = [1, 1]} : vector<256x128xf32> to vector<16x128xf32>
    %c0_14 = arith.constant 0 : index
    %c1152 = arith.constant 1152 : index
    %24 = vector.load %arg9[%c0_14, %c1152] : memref<16x2048xf32, #tpu.memory_space<vmem>>, vector<16x128xf32>
    tpu.vector_store %arg9[%c0_14, %c1152], %23 {strides = array<i32>} : memref<16x2048xf32, #tpu.memory_space<vmem>>, vector<16x128xf32>,
    %25 = vector.extract_strided_slice %4 {offsets = [160, 0], sizes = [16, 128], strides = [1, 1]} : vector<256x128xf32> to vector<16x128xf32>
    %c0_15 = arith.constant 0 : index
    %c1280 = arith.constant 1280 : index
    %26 = vector.load %arg9[%c0_15, %c1280] : memref<16x2048xf32, #tpu.memory_space<vmem>>, vector<16x128xf32>
    tpu.vector_store %arg9[%c0_15, %c1280], %25 {strides = array<i32>} : memref<16x2048xf32, #tpu.memory_space<vmem>>, vector<16x128xf32>,
    %27 = vector.extract_strided_slice %4 {offsets = [176, 0], sizes = [16, 128], strides = [1, 1]} : vector<256x128xf32> to vector<16x128xf32>
    %c0_16 = arith.constant 0 : index
    %c1408 = arith.constant 1408 : index
    %28 = vector.load %arg9[%c0_16, %c1408] : memref<16x2048xf32, #tpu.memory_space<vmem>>, vector<16x128xf32>
    tpu.vector_store %arg9[%c0_16, %c1408], %27 {strides = array<i32>} : memref<16x2048xf32, #tpu.memory_space<vmem>>, vector<16x128xf32>,
    %29 = vector.extract_strided_slice %4 {offsets = [192, 0], sizes = [16, 128], strides = [1, 1]} : vector<256x128xf32> to vector<16x128xf32>
    %c0_17 = arith.constant 0 : index
    %c1536 = arith.constant 1536 : index
    %30 = vector.load %arg9[%c0_17, %c1536] : memref<16x2048xf32, #tpu.memory_space<vmem>>, vector<16x128xf32>
    tpu.vector_store %arg9[%c0_17, %c1536], %29 {strides = array<i32>} : memref<16x2048xf32, #tpu.memory_space<vmem>>, vector<16x128xf32>,
    %31 = vector.extract_strided_slice %4 {offsets = [208, 0], sizes = [16, 128], strides = [1, 1]} : vector<256x128xf32> to vector<16x128xf32>
    %c0_18 = arith.constant 0 : index
    %c1664 = arith.constant 1664 : index
    %32 = vector.load %arg9[%c0_18, %c1664] : memref<16x2048xf32, #tpu.memory_space<vmem>>, vector<16x128xf32>
    tpu.vector_store %arg9[%c0_18, %c1664], %31 {strides = array<i32>} : memref<16x2048xf32, #tpu.memory_space<vmem>>, vector<16x128xf32>,
    %33 = vector.extract_strided_slice %4 {offsets = [224, 0], sizes = [16, 128], strides = [1, 1]} : vector<256x128xf32> to vector<16x128xf32>
    %c0_19 = arith.constant 0 : index
    %c1792 = arith.constant 1792 : index
    %34 = vector.load %arg9[%c0_19, %c1792] : memref<16x2048xf32, #tpu.memory_space<vmem>>, vector<16x128xf32>
    tpu.vector_store %arg9[%c0_19, %c1792], %33 {strides = array<i32>} : memref<16x2048xf32, #tpu.memory_space<vmem>>, vector<16x128xf32>,
    %35 = vector.extract_strided_slice %2 {offsets = [240, 0], sizes = [16, 128], strides = [1, 1]} : vector<256x128xf32> to vector<16x128xf32>
    %c0_20 = arith.constant 0 : index
    %c1920 = arith.constant 1920 : index
    %36 = vector.load %arg9[%c0_20, %c1920] : memref<16x2048xf32, #tpu.memory_space<vmem>>, vector<16x128xf32>
    tpu.vector_store %arg9[%c0_20, %c1920], %35 {strides = array<i32>} : memref<16x2048xf32, #tpu.memory_space<vmem>>, vector<16x128xf32>,
    %c0_21 = arith.constant 0 : index
    %c0_22 = arith.constant 0 : index
    %37 = vector.load %arg9[%c0_21, %c0_22] : memref<16x2048xf32, #tpu.memory_space<vmem>>, vector<16x2048xf32>
    %c0_23 = arith.constant 0 : index
    %c0_24 = arith.constant 0 : index
    %38 = vector.load %arg3[%c0_23, %c0_24] : memref<2048x128xf32, #tpu.memory_space<vmem>>, vector<2048x128xf32>
    %cst_25 = arith.constant dense<0.000000e+00> : vector<16x128xf32>
    %39 = tpu.matmul %37, %38, %cst_25 {dimension_numbers = #tpu.dot_dimension_numbers<[1], [0], [0], [1], [0, 0, 1, 1], [], []>} : vector<16x2048xf32>, vector<2048x128xf32>, vector<16x128xf32> -> vector<16x128xf32>
    %c0_26 = arith.constant 0 : index
    %c0_27 = arith.constant 0 : index
    %40 = vector.load %arg4[%c0_26, %c0_27] : memref<1x128xf32, #tpu.memory_space<vmem>>, vector<1x128xf32>
    %41 = vector.broadcast %40 : vector<1x128xf32> to vector<16x128xf32>
    %42 = arith.addf %39, %41 : vector<16x128xf32>
    %cst_28 = arith.constant 0.000000e+00 : f32
    %43 = vector.broadcast %cst_28 : f32 to vector<16x128xf32>
    %44 = arith.maximumf %42, %43 : vector<16x128xf32>
    %c0_29 = arith.constant 0 : index
    %c0_30 = arith.constant 0 : index
    %45 = vector.load %arg5[%c0_29, %c0_30] : memref<128x128xf32, #tpu.memory_space<vmem>>, vector<128x128xf32>
    %cst_31 = arith.constant dense<0.000000e+00> : vector<16x128xf32>
    %46 = tpu.matmul %44, %45, %cst_31 {dimension_numbers = #tpu.dot_dimension_numbers<[1], [0], [0], [1], [0, 0, 1, 1], [], []>} : vector<16x128xf32>, vector<128x128xf32>, vector<16x128xf32> -> vector<16x128xf32>
    %c0_32 = arith.constant 0 : index
    %c0_33 = arith.constant 0 : index
    %47 = vector.load %arg6[%c0_32, %c0_33] : memref<1x128xf32, #tpu.memory_space<vmem>>, vector<1x128xf32>
    %48 = vector.broadcast %47 : vector<1x128xf32> to vector<16x128xf32>
    %49 = arith.addf %46, %48 : vector<16x128xf32>
    %cst_34 = arith.constant 0.000000e+00 : f32
    %50 = vector.broadcast %cst_34 : f32 to vector<16x128xf32>
    %51 = arith.maximumf %49, %50 : vector<16x128xf32>
    %52 = arith.mulf %51, %51 : vector<16x128xf32>
    %cst_35 = arith.constant dense<0.000000e+00> : vector<16xf32>
    %53 = vector.multi_reduction <add>, %52, %cst_35 [1] : vector<16x128xf32> to vector<16xf32>
    %54 = vector.shape_cast %53 : vector<16xf32> to vector<16x1xf32>
    %c0_36 = arith.constant 0 : index
    %c0_37 = arith.constant 0 : index
    %55 = vector.load %arg7[%c0_36, %c0_37] : memref<1x128xf32, #tpu.memory_space<vmem>>, vector<1x128xf32>
    %56 = vector.broadcast %55 : vector<1x128xf32> to vector<16x128xf32>
    %57 = arith.mulf %52, %56 : vector<16x128xf32>
    %cst_38 = arith.constant dense<0.000000e+00> : vector<16xf32>
    %58 = vector.multi_reduction <add>, %57, %cst_38 [1] : vector<16x128xf32> to vector<16xf32>
    %59 = vector.shape_cast %58 : vector<16xf32> to vector<16x1xf32>
    %60 = arith.divf %59, %54 : vector<16x1xf32>
    %c0_39 = arith.constant 0 : index
    %c0_40 = arith.constant 0 : index
    %61 = vector.load %arg8[%c0_39, %c0_40] : memref<16x1xf32, #tpu.memory_space<vmem>>, vector<16x1xf32>
    tpu.vector_store %arg8[%c0_39, %c0_40], %60 {strides = array<i32>} : memref<16x1xf32, #tpu.memory_space<vmem>>, vector<16x1xf32>,
    return
  }
  func.func @transform_0(%arg0: i32) -> (i32, i32) {
    %c0_i32 = arith.constant 0 : i32
    %c0_i32_0 = arith.constant 0 : i32
    return %arg0, %c0_i32 : i32, i32
  }
  func.func @transform_1(%arg0: i32) -> (i32, i32) {
    %c0_i32 = arith.constant 0 : i32
    %c0_i32_0 = arith.constant 0 : i32
    %c0_i32_1 = arith.constant 0 : i32
    return %c0_i32, %c0_i32_0 : i32, i32
  }
  func.func @transform_2(%arg0: i32) -> (i32, i32) {
    %c0_i32 = arith.constant 0 : i32
    %c0_i32_0 = arith.constant 0 : i32
    %c0_i32_1 = arith.constant 0 : i32
    return %c0_i32, %c0_i32_0 : i32, i32
  }
  func.func @transform_3(%arg0: i32) -> (i32, i32) {
    %c0_i32 = arith.constant 0 : i32
    %c0_i32_0 = arith.constant 0 : i32
    %c0_i32_1 = arith.constant 0 : i32
    return %c0_i32, %c0_i32_0 : i32, i32
  }
  func.func @transform_4(%arg0: i32) -> (i32, i32) {
    %c0_i32 = arith.constant 0 : i32
    %c0_i32_0 = arith.constant 0 : i32
    %c0_i32_1 = arith.constant 0 : i32
    return %c0_i32, %c0_i32_0 : i32, i32
  }
  func.func @transform_5(%arg0: i32) -> (i32, i32) {
    %c0_i32 = arith.constant 0 : i32
    %c0_i32_0 = arith.constant 0 : i32
    %c0_i32_1 = arith.constant 0 : i32
    return %c0_i32, %c0_i32_0 : i32, i32
  }
  func.func @transform_6(%arg0: i32) -> (i32, i32) {
    %c0_i32 = arith.constant 0 : i32
    %c0_i32_0 = arith.constant 0 : i32
    %c0_i32_1 = arith.constant 0 : i32
    return %c0_i32, %c0_i32_0 : i32, i32
  }
  func.func @transform_7(%arg0: i32) -> (i32, i32) {
    %c0_i32 = arith.constant 0 : i32
    %c0_i32_0 = arith.constant 0 : i32
    return %arg0, %c0_i32 : i32, i32
  }
}

</mosaic_0001>

<llo_original>
// kernel: actor_forward.1
$region0: #{actor_forward.1}
  #allocation0 [shape = 'u32[]', space=smem, size = 0x4, offset = 0x4, fixed_abs, tag = 'smem constant byte address 0x4 - core index']
  #allocation1 [shape = 'u32[144,128]{1,0:T(1,128)}', space=vmem, size = 0x12000, scoped, tag = 'internal scratch']
  #allocation2 [shape = 'f32[16,2048]{1,0:T(8,128)}', space=vmem, size = 0x20000, scoped, tag = 'scratch operand']
  %s0 = inlined_call_operand.vmem [shape: f32[512,16], index: 0, kind: input, shape index: {}]
  %s1 = inlined_call_operand.vmem [shape: f32[16,128], index: 1, kind: input, shape index: {}]
  %s2 = inlined_call_operand.hbm [shape: f32[2048,128], index: 2, kind: input, shape index: {}]
  %s3 = inlined_call_operand.vmem [shape: f32[1,128], index: 3, kind: input, shape index: {}]
  %s4 = inlined_call_operand.vmem [shape: f32[128,128], index: 4, kind: input, shape index: {}]
  %s5 = inlined_call_operand.vmem [shape: f32[1,128], index: 5, kind: input, shape index: {}]
  %s6 = inlined_call_operand.vmem [shape: f32[1,128], index: 6, kind: input, shape index: {}]
  %s7 = inlined_call_operand.vmem [shape: f32[32,1], index: 7, kind: output, shape index: {}]
  %s8 = sld [smem:[#allocation0]]
  $region65: #{actor_forward.1} parent=0
    _
  %s10 = ssub.s32 1, %s8
  %s11 = scalar_select 0, %s10, %s8
  $region1: #{actor_forward.1} parent=0
    #allocation3 [shape = 'u8[1048576]{0}', space=vmem, size = 0x100000, scoped, tag = 'input window, operand 2, single buffered']
    #allocation4 [shape = 's32[2]{0}', space=sflag, size = 0x8, scoped, tag = 'scoped memory for actor_forward.1']
    %12 = vsyncpa [#allocation4], 0
    loop: start=0, step=1, limit=4
    $region2: #{actor_forward.1} parent=1 // loop_pre_header
      _
    $region3: #{actor_forward.1} parent=1 // loop_header
      %s14 = sphi 0, %s18
      %p15 = scmp.ge.s32.totalorder %s14, 4
      %s24 = sphi 0, %s26
      %s27 = sphi 0, %s24
      %s28 = sphi 0, %s27
      %s44 = sphi 0, %s28
      %s48 = sphi 0, %s48
      %s50 = sphi 0, %s48
      %s51 = sphi 0, %s50
      %s65 = sphi 0, %s51
      %s69 = sphi 0, %s69
      %s71 = sphi 0, %s69
      %s72 = sphi 0, %s71
      %s86 = sphi 0, %s72
      %s90 = sphi 0, %s90
      %s92 = sphi 0, %s90
      %s93 = sphi 0, %s92
      %s107 = sphi 0, %s93
      %s111 = sphi 0, %s111
      %s113 = sphi 0, %s111
      %s114 = sphi 0, %s113
      %s128 = sphi 0, %s114
      %s132 = sphi 0, %s132
      %s134 = sphi 0, %s132
      %s135 = sphi 0, %s134
      %s149 = sphi 0, %s135
      %s153 = sphi 0, %s153
      %s155 = sphi 0, %s153
      %s156 = sphi 0, %s155
      %s170 = sphi 0, %s156
      %s176 = sphi 0, %s178
      %s179 = sphi 0, %s176
      %s180 = sphi 0, %s179
      %s196 = sphi 0, %s180
    $region4: #{actor_forward.1} parent=1 // loop_header_branch
      %17 = sbr.rel (%p15) target = $region8
    $region5: #{actor_forward.1} parent=1 // loop_body
      %s19 = ssub.s32 %s14, 1
      %s20 = ssub.s32 %s14, 2
      %s21 = sadd.s32 %s14, 1
      %s22 = ssub.s32 %s14, %s21
      %p23 = scmp.eq.s32.totalorder %s22, 0
      %s25 = sadd.s32 %s24, 1
      %s26 = scalar_select %p23, %s24, %s25
      %p29 = pneg %p23
      %p30 = scmp.eq.s32.totalorder %s14, 1
      %p31 = por %p29, %p30
      %p32 = scmp.ne.s32.totalorder %s24, %s27
      %p33 = scmp.eq.s32.totalorder %s14, 0
      %p34 = por %p32, %p33
      %p35 = scmp.ne.s32.totalorder %s24, %s27
      %p36 = scmp.eq.s32.totalorder %s19, 1
      %p37 = por %p35, %p36
      %p38 = scmp.ne.s32.totalorder %s27, %s28
      %p39 = scmp.eq.s32.totalorder %s19, 0
      %p40 = por %p38, %p39
      %p41 = scmp.ne.s32.totalorder %s27, %s28
      %p42 = scmp.eq.s32.totalorder %s20, 1
      %p43 = por %p41, %p42
      %p45 = scmp.ne.s32.totalorder %s28, %s44
      %p46 = scmp.eq.s32.totalorder %s20, 0
      %p47 = por %p45, %p46
      %s49 = sadd.s32 %s48, 1
      %p52 = scmp.eq.s32.totalorder %s14, 1
      %p53 = scmp.ne.s32.totalorder %s48, %s50
      %p54 = scmp.eq.s32.totalorder %s14, 0
      %p55 = por %p53, %p54
      %p56 = scmp.ne.s32.totalorder %s48, %s50
      %p57 = scmp.eq.s32.totalorder %s19, 1
      %p58 = por %p56, %p57
      %p59 = scmp.ne.s32.totalorder %s50, %s51
      %p60 = scmp.eq.s32.totalorder %s19, 0
      %p61 = por %p59, %p60
      %p62 = scmp.ne.s32.totalorder %s50, %s51
      %p63 = scmp.eq.s32.totalorder %s20, 1
      %p64 = por %p62, %p63
      %p66 = scmp.ne.s32.totalorder %s51, %s65
      %p67 = scmp.eq.s32.totalorder %s20, 0
      %p68 = por %p66, %p67
      %s70 = sadd.s32 %s69, 1
      %p73 = scmp.eq.s32.totalorder %s14, 1
      %p74 = scmp.ne.s32.totalorder %s69, %s71
      %p75 = scmp.eq.s32.totalorder %s14, 0
      %p76 = por %p74, %p75
      %p77 = scmp.ne.s32.totalorder %s69, %s71
      %p78 = scmp.eq.s32.totalorder %s19, 1
      %p79 = por %p77, %p78
      %p80 = scmp.ne.s32.totalorder %s71, %s72
      %p81 = scmp.eq.s32.totalorder %s19, 0
      %p82 = por %p80, %p81
      %p83 = scmp.ne.s32.totalorder %s71, %s72
      %p84 = scmp.eq.s32.totalorder %s20, 1
      %p85 = por %p83, %p84
      %p87 = scmp.ne.s32.totalorder %s72, %s86
      %p88 = scmp.eq.s32.totalorder %s20, 0
      %p89 = por %p87, %p88
      %s91 = sadd.s32 %s90, 1
      %p94 = scmp.eq.s32.totalorder %s14, 1
      %p95 = scmp.ne.s32.totalorder %s90, %s92
      %p96 = scmp.eq.s32.totalorder %s14, 0
      %p97 = por %p95, %p96
      %p98 = scmp.ne.s32.totalorder %s90, %s92
      %p99 = scmp.eq.s32.totalorder %s19, 1
      %p100 = por %p98, %p99
      %p101 = scmp.ne.s32.totalorder %s92, %s93
      %p102 = scmp.eq.s32.totalorder %s19, 0
      %p103 = por %p101, %p102
      %p104 = scmp.ne.s32.totalorder %s92, %s93
      %p105 = scmp.eq.s32.totalorder %s20, 1
      %p106 = por %p104, %p105
      %p108 = scmp.ne.s32.totalorder %s93, %s107
      %p109 = scmp.eq.s32.totalorder %s20, 0
      %p110 = por %p108, %p109
      %s112 = sadd.s32 %s111, 1
      %p115 = scmp.eq.s32.totalorder %s14, 1
      %p116 = scmp.ne.s32.totalorder %s111, %s113
      %p117 = scmp.eq.s32.totalorder %s14, 0
      %p118 = por %p116, %p117
      %p119 = scmp.ne.s32.totalorder %s111, %s113
      %p120 = scmp.eq.s32.totalorder %s19, 1
      %p121 = por %p119, %p120
      %p122 = scmp.ne.s32.totalorder %s113, %s114
      %p123 = scmp.eq.s32.totalorder %s19, 0
      %p124 = por %p122, %p123
      %p125 = scmp.ne.s32.totalorder %s113, %s114
      %p126 = scmp.eq.s32.totalorder %s20, 1
      %p127 = por %p125, %p126
      %p129 = scmp.ne.s32.totalorder %s114, %s128
      %p130 = scmp.eq.s32.totalorder %s20, 0
      %p131 = por %p129, %p130
      %s133 = sadd.s32 %s132, 1
      %p136 = scmp.eq.s32.totalorder %s14, 1
      %p137 = scmp.ne.s32.totalorder %s132, %s134
      %p138 = scmp.eq.s32.totalorder %s14, 0
      %p139 = por %p137, %p138
      %p140 = scmp.ne.s32.totalorder %s132, %s134
      %p141 = scmp.eq.s32.totalorder %s19, 1
      %p142 = por %p140, %p141
      %p143 = scmp.ne.s32.totalorder %s134, %s135
      %p144 = scmp.eq.s32.totalorder %s19, 0
      %p145 = por %p143, %p144
      %p146 = scmp.ne.s32.totalorder %s134, %s135
      %p147 = scmp.eq.s32.totalorder %s20, 1
      %p148 = por %p146, %p147
      %p150 = scmp.ne.s32.totalorder %s135, %s149
      %p151 = scmp.eq.s32.totalorder %s20, 0
      %p152 = por %p150, %p151
      %s154 = sadd.s32 %s153, 1
      %p157 = scmp.eq.s32.totalorder %s14, 1
      %p158 = scmp.ne.s32.totalorder %s153, %s155
      %p159 = scmp.eq.s32.totalorder %s14, 0
      %p160 = por %p158, %p159
      %p161 = scmp.ne.s32.totalorder %s153, %s155
      %p162 = scmp.eq.s32.totalorder %s19, 1
      %p163 = por %p161, %p162
      %p164 = scmp.ne.s32.totalorder %s155, %s156
      %p165 = scmp.eq.s32.totalorder %s19, 0
      %p166 = por %p164, %p165
      %p167 = scmp.ne.s32.totalorder %s155, %s156
      %p168 = scmp.eq.s32.totalorder %s20, 1
      %p169 = por %p167, %p168
      %p171 = scmp.ne.s32.totalorder %s156, %s170
      %p172 = scmp.eq.s32.totalorder %s20, 0
      %p173 = por %p171, %p172
      %s174 = ssub.s32 %s14, %s21
      %p175 = scmp.eq.s32.totalorder %s174, 0
      %s177 = sadd.s32 %s176, 1
      %s178 = scalar_select %p175, %s176, %s177
      %p181 = pneg %p175
      %p182 = scmp.eq.s32.totalorder %s14, 1
      %p183 = por %p181, %p182
      %p184 = scmp.ne.s32.totalorder %s176, %s179
      %p185 = scmp.eq.s32.totalorder %s14, 0
      %p186 = por %p184, %p185
      %p187 = scmp.ne.s32.totalorder %s176, %s179
      %p188 = scmp.eq.s32.totalorder %s19, 1
      %p189 = por %p187, %p188
      %p190 = scmp.ne.s32.totalorder %s179, %s180
      %p191 = scmp.eq.s32.totalorder %s19, 0
      %p192 = por %p190, %p191
      %p193 = scmp.ne.s32.totalorder %s179, %s180
      %p194 = scmp.eq.s32.totalorder %s20, 1
      %p195 = por %p193, %p194
      %p197 = scmp.ne.s32.totalorder %s180, %s196
      %p198 = scmp.eq.s32.totalorder %s20, 0
      %p199 = por %p197, %p198
      %p200 = scmp.le.s32.totalorder 1, %s14
      %p201 = scmp.lt.s32.totalorder %s14, 3
      %p202 = pnand %p200, %p201
      %p203 = pneg %p202
      // Predicated region
      $region9: #{actor_forward.1} parent=5 // pred_check
        _
      $region10: #{actor_forward.1} parent=5 // pred_check_branch
        %205 = sbr.rel (%p202) target = $region12
      $region11: #{actor_forward.1} parent=5 // pred_region
        %s206 = ssub.s32 %s14, 1
        // Predicated region
        $region13: #{actor_forward.1} parent=11 // pred_check
          %p207 = pneg %p61
        $region14: #{actor_forward.1} parent=11 // pred_check_branch
          %209 = sbr.rel (%p207) target = $region16
        $region15: #{actor_forward.1} parent=11 // pred_region
          _
        $region16: #{actor_forward.1} parent=11 // pred_fallthru
          _
        // Predicated region
        $region17: #{actor_forward.1} parent=11 // pred_check
          %p210 = pneg %p82
        $region18: #{actor_forward.1} parent=11 // pred_check_branch
          %212 = sbr.rel (%p210) target = $region20
        $region19: #{actor_forward.1} parent=11 // pred_region
          %s214 = ssub.s32 32768, 32768
          %215 = vsyncadd [#allocation4], %s214
          %s216 = sshll.u32 [#allocation3], 4
          %s217 = int_to_ptr.vmem [resolvable:$true] %s216
          %222 = dma.hbm_to_vmem [thread:$0]  %s2, 32768, %s217, [#allocation4], 128, 128, 8
        $region20: #{actor_forward.1} parent=11 // pred_fallthru
          _
        // Predicated region
        $region21: #{actor_forward.1} parent=11 // pred_check
          %p223 = pneg %p103
        $region22: #{actor_forward.1} parent=11 // pred_check_branch
          %225 = sbr.rel (%p223) target = $region24
        $region23: #{actor_forward.1} parent=11 // pred_region
          _
        $region24: #{actor_forward.1} parent=11 // pred_fallthru
          _
        // Predicated region
        $region25: #{actor_forward.1} parent=11 // pred_check
          %p226 = pneg %p124
        $region26: #{actor_forward.1} parent=11 // pred_check_branch
          %228 = sbr.rel (%p226) target = $region28
        $region27: #{actor_forward.1} parent=11 // pred_region
          _
        $region28: #{actor_forward.1} parent=11 // pred_fallthru
          _
        // Predicated region
        $region29: #{actor_forward.1} parent=11 // pred_check
          %p229 = pneg %p145
        $region30: #{actor_forward.1} parent=11 // pred_check_branch
          %231 = sbr.rel (%p229) target = $region32
        $region31: #{actor_forward.1} parent=11 // pred_region
          _
        $region32: #{actor_forward.1} parent=11 // pred_fallthru
          _
        // Predicated region
        $region33: #{actor_forward.1} parent=11 // pred_check
          %p232 = pneg %p166
        $region34: #{actor_forward.1} parent=11 // pred_check_branch
          %234 = sbr.rel (%p232) target = $region36
        $region35: #{actor_forward.1} parent=11 // pred_region
          _
        $region36: #{actor_forward.1} parent=11 // pred_fallthru
          _
      $region12: #{actor_forward.1} parent=5 // pred_fallthru
        _
      %p235 = scmp.lt.s32.totalorder %s14, 2
      // Predicated region
      $region37: #{actor_forward.1} parent=5 // pred_check
        %p236 = pneg %p235
      $region38: #{actor_forward.1} parent=5 // pred_check_branch
        %238 = sbr.rel (%p236) target = $region40
      $region39: #{actor_forward.1} parent=5 // pred_region
        // Predicated region
        $region41: #{actor_forward.1} parent=39 // pred_check
          %p239 = pneg %p34
        $region42: #{actor_forward.1} parent=39 // pred_check_branch
          %241 = sbr.rel (%p239) target = $region44
        $region43: #{actor_forward.1} parent=39 // pred_region
          %s242 = smul.u32 32, %s14
          %p243 = scmp.lt.s32.totalorder %s242, 63
          %s244 = scalar_select %p243, %s242, 63
          %s245 = smul.addr %s244, 8
          %s246 = scalar_lea.vmem %s0, %s245
          %s247 = smul.u32 32, %s14
        $region44: #{actor_forward.1} parent=39 // pred_fallthru
          _
      $region40: #{actor_forward.1} parent=5 // pred_fallthru
        _
      %p248 = scmp.le.s32.totalorder 1, %s14
      %p249 = scmp.lt.s32.totalorder %s14, 3
      %p250 = pnand %p248, %p249
      %p251 = pneg %p250
      // Predicated region
      $region45: #{actor_forward.1} parent=5 // pred_check
        _
      $region46: #{actor_forward.1} parent=5 // pred_check_branch
        %253 = sbr.rel (%p250) target = $region48
      $region47: #{actor_forward.1} parent=5 // pred_region
        %s254 = ssub.s32 %s14, 1
        // Predicated region
        $region49: #{actor_forward.1} parent=47 // pred_check
          %p255 = pneg %p82
        $region50: #{actor_forward.1} parent=47 // pred_check_branch
          %257 = sbr.rel (%p255) target = $region52
        $region51: #{actor_forward.1} parent=47 // pred_region
          %258 = dma.done [#allocation4], 32768
        $region52: #{actor_forward.1} parent=47 // pred_fallthru
          _
        %s259 = smul.u32 32, %s19
        %p260 = scmp.lt.s32.totalorder %s259, 63
        %s261 = scalar_select %p260, %s259, 63
        %s262 = smul.addr %s261, 8
        %s263 = scalar_lea.vmem %s0, %s262
        %p264 = pneg %p40
        %p265 = pneg %p37
        %p266 = pneg %p61
        %p267 = pneg %p58
        %p268 = pneg %p82
        %p269 = pneg %p79
        %p270 = pneg %p103
        %p271 = pneg %p100
        %p272 = pneg %p124
        %p273 = pneg %p121
        %p274 = pneg %p145
        %p275 = pneg %p142
        %p276 = pneg %p166
        %p277 = pneg %p163
        %p278 = pneg %p192
        %p279 = pneg %p189
        %s280 = smul.u32 2, %s19
        %p281 = scmp.lt.s32.totalorder %s280, 3
        %s282 = scalar_select %p281, %s280, 3
        %s283 = smul.addr %s282, 8
        %s284 = scalar_lea.vmem %s7, %s283
        %s285 = smul.u32 32, %s19
        %p286 = scmp.lt.s32.totalorder %s285, 63
        %s287 = scalar_select %p286, %s285, 63
        %s288 = smul.addr %s287, 8
        %s289 = scalar_lea.vmem %s0, %s288
        %s290 = smul.u32 32, %s19
        %s291 = smul.u32 2, %s19
        %p292 = scmp.lt.s32.totalorder %s291, 3
        %s293 = scalar_select %p292, %s291, 3
        %s294 = smul.addr %s293, 8
        %s295 = scalar_lea.vmem %s7, %s294
        %s296 = smul.u32 2, %s19
        %v297 = vld [vmem:[%s289] sm:$0xff]
        %v298 = vld [vmem:[%s289 + $0x8] sm:$0xff]
        %v299 = vld [vmem:[%s289 + $0x10] sm:$0xff]
        %v300 = vld [vmem:[%s289 + $0x18] sm:$0xff]
        %v301 = vld [vmem:[%s289 + $0x20] sm:$0xff]
        %v302 = vld [vmem:[%s289 + $0x28] sm:$0xff]
        %v303 = vld [vmem:[%s289 + $0x30] sm:$0xff]
        %v304 = vld [vmem:[%s289 + $0x38] sm:$0xff]
        %v305 = vld [vmem:[%s289 + $0x40] sm:$0xff]
        %v306 = vld [vmem:[%s289 + $0x48] sm:$0xff]
        %v307 = vld [vmem:[%s289 + $0x50] sm:$0xff]
        %v308 = vld [vmem:[%s289 + $0x58] sm:$0xff]
        %v309 = vld [vmem:[%s289 + $0x60] sm:$0xff]
        %v310 = vld [vmem:[%s289 + $0x68] sm:$0xff]
        %v311 = vld [vmem:[%s289 + $0x70] sm:$0xff]
        %v312 = vld [vmem:[%s289 + $0x78] sm:$0xff]
        %v313 = vld [vmem:[%s289 + $0x80] sm:$0xff]
        %v314 = vld [vmem:[%s289 + $0x88] sm:$0xff]
        %v315 = vld [vmem:[%s289 + $0x90] sm:$0xff]
        %v316 = vld [vmem:[%s289 + $0x98] sm:$0xff]
        %v317 = vld [vmem:[%s289 + $0xa0] sm:$0xff]
        %v318 = vld [vmem:[%s289 + $0xa8] sm:$0xff]
        %v319 = vld [vmem:[%s289 + $0xb0] sm:$0xff]
        %v320 = vld [vmem:[%s289 + $0xb8] sm:$0xff]
        %v321 = vld [vmem:[%s289 + $0xc0] sm:$0xff]
        %v322 = vld [vmem:[%s289 + $0xc8] sm:$0xff]
        %v323 = vld [vmem:[%s289 + $0xd0] sm:$0xff]
        %v324 = vld [vmem:[%s289 + $0xd8] sm:$0xff]
        %v325 = vld [vmem:[%s289 + $0xe0] sm:$0xff]
        %v326 = vld [vmem:[%s289 + $0xe8] sm:$0xff]
        %v327 = vld [vmem:[%s289 + $0xf0] sm:$0xff]
        %v328 = vld [vmem:[%s289 + $0xf8] sm:$0xff]
        %v329 = vld [vmem:[%s1] sm:$0xff]
        %v330 = vld [vmem:[%s1 + $0x8] sm:$0xff]
        %vm331 = vcmask 130048
        %v333 = vsel %vm331, %v297, 0
        %v336 = vsel %vm331, %v298, 0
        %v339 = vsel %vm331, %v299, 0
        %v342 = vsel %vm331, %v300, 0
        %v345 = vsel %vm331, %v301, 0
        %v348 = vsel %vm331, %v302, 0
        %v351 = vsel %vm331, %v303, 0
        %v354 = vsel %vm331, %v304, 0
        %v357 = vsel %vm331, %v305, 0
        %v360 = vsel %vm331, %v306, 0
        %v363 = vsel %vm331, %v307, 0
        %v366 = vsel %vm331, %v308, 0
        %v369 = vsel %vm331, %v309, 0
        %v372 = vsel %vm331, %v310, 0
        %v375 = vsel %vm331, %v311, 0
        %v378 = vsel %vm331, %v312, 0
        %v381 = vsel %vm331, %v313, 0
        %v384 = vsel %vm331, %v314, 0
        %v387 = vsel %vm331, %v315, 0
        %v390 = vsel %vm331, %v316, 0
        %v393 = vsel %vm331, %v317, 0
        %v396 = vsel %vm331, %v318, 0
        %v399 = vsel %vm331, %v319, 0
        %v402 = vsel %vm331, %v320, 0
        %v405 = vsel %vm331, %v321, 0
        %v408 = vsel %vm331, %v322, 0
        %v411 = vsel %vm331, %v323, 0
        %v414 = vsel %vm331, %v324, 0
        %v417 = vsel %vm331, %v325, 0
        %v420 = vsel %vm331, %v326, 0
        %v423 = vsel %vm331, %v327, 0
        %v426 = vsel %vm331, %v328, 0
        %428 = vmatprep.subr.mxu0 0.0
        %429 = vmatpush1.msra.mxu0 %v329
        %430 = vmatprep.subr.mxu0 0.0
        %431 = vmatpush1.msra.mxu0 %v330
        %432 = vmatprep.subr.mxu0 0.0
        %433 = vmatpush1.msra.mxu0 0.0
        %434 = vmatprep.subr.mxu0 0.0
        %435 = vmatpush1.msra.mxu0 0.0
        %436 = vmatprep.subr.mxu0 0.0
        %437 = vmatpush1.msra.mxu0 0.0
        %438 = vmatprep.subr.mxu0 0.0
        %439 = vmatpush1.msra.mxu0 0.0
        %440 = vmatprep.subr.mxu0 0.0
        %441 = vmatpush1.msra.mxu0 0.0
        %442 = vmatprep.subr.mxu0 0.0
        %443 = vmatpush1.msra.mxu0 0.0
        %444 = vmatprep.subr.mxu0 0.0
        %445 = vmatpush1.msra.mxu0 0.0
        %446 = vmatprep.subr.mxu0 0.0
        %447 = vmatpush1.msra.mxu0 0.0
        %448 = vmatprep.subr.mxu0 0.0
        %449 = vmatpush1.msra.mxu0 0.0
        %450 = vmatprep.subr.mxu0 0.0
        %451 = vmatpush1.msra.mxu0 0.0
        %452 = vmatprep.subr.mxu0 0.0
        %453 = vmatpush1.msra.mxu0 0.0
        %454 = vmatprep.subr.mxu0 0.0
        %455 = vmatpush1.msra.mxu0 0.0
        %456 = vmatprep.subr.mxu0 0.0
        %457 = vmatpush1.msra.mxu0 0.0
        %458 = vmatprep.subr.mxu0 0.0
        %459 = vmatpush1.msra.mxu0 0.0
        %460 = vmatprep.subr.mxu0 0.0
        %461 = vmatpush1.msra.mxu0 0.0
        %462 = vmatprep.subr.mxu0 0.0
        %463 = vmatpush1.msra.mxu0 0.0
        %464 = vmatprep.subr.mxu0 0.0
        %465 = vmatpush1.msra.mxu0 0.0
        %466 = vmatprep.subr.mxu0 0.0
        %467 = vmatpush1.msra.mxu0 0.0
        %468 = vmatprep.subr.mxu0 0.0
        %469 = vmatpush1.msra.mxu0 0.0
        %470 = vmatprep.subr.mxu0 0.0
        %471 = vmatpush1.msra.mxu0 0.0
        %472 = vmatprep.subr.mxu0 0.0
        %473 = vmatpush1.msra.mxu0 0.0
        %474 = vmatprep.subr.mxu0 0.0
        %475 = vmatpush1.msra.mxu0 0.0
        %476 = vmatprep.subr.mxu0 0.0
        %477 = vmatpush1.msra.mxu0 0.0
        %478 = vmatprep.subr.mxu0 0.0
        %479 = vmatpush1.msra.mxu0 0.0
        %480 = vmatprep.subr.mxu0 0.0
        %481 = vmatpush1.msra.mxu0 0.0
        %482 = vmatprep.subr.mxu0 0.0
        %483 = vmatpush1.msra.mxu0 0.0
        %484 = vmatprep.subr.mxu0 0.0
        %485 = vmatpush1.msra.mxu0 0.0
        %486 = vmatprep.subr.mxu0 0.0
        %487 = vmatpush1.msra.mxu0 0.0
        %488 = vmatprep.subr.mxu0 0.0
        %489 = vmatpush1.msra.mxu0 0.0
        %490 = vmatprep.subr.mxu0 0.0
        %491 = vmatpush1.msra.mxu0 0.0
        %492 = vmatprep.mubr.f32.mxu0 0.0
        %493 = vmatmul.mubr.f32.gmra.mrb[0].mxu0 %v333
        %v494 = vpop.f32.mrb[0].mxu0
        %v495 = vadd.f32 0.0, %v494
        %v496 = vpop.f32.mrb[0].mxu0
        %497 = vmatprep.mubr.f32.mxu0 0.0
        %498 = vmatmul.mubr.f32.gmra.mrb[0].mxu0 %v336
        %v499 = vpop.f32.mrb[0].mxu0
        %v500 = vadd.f32 0.0, %v499
        %v501 = vpop.f32.mrb[0].mxu0
        %502 = vmatprep.mubr.f32.mxu0 0.0
        %503 = vmatmul.mubr.f32.gmra.mrb[0].mxu0 %v339
        %v504 = vpop.f32.mrb[0].mxu0
        %v505 = vadd.f32 0.0, %v504
        %v506 = vpop.f32.mrb[0].mxu0
        %507 = vmatprep.mubr.f32.mxu0 0.0
        %508 = vmatmul.mubr.f32.gmra.mrb[0].mxu0 %v342
        %v509 = vpop.f32.mrb[0].mxu0
        %v510 = vadd.f32 0.0, %v509
        %v511 = vpop.f32.mrb[0].mxu0
        %512 = vmatprep.mubr.f32.mxu0 0.0
        %513 = vmatmul.mubr.f32.gmra.mrb[0].mxu0 %v345
        %v514 = vpop.f32.mrb[0].mxu0
        %v515 = vadd.f32 0.0, %v514
        %v516 = vpop.f32.mrb[0].mxu0
        %517 = vmatprep.mubr.f32.mxu0 0.0
        %518 = vmatmul.mubr.f32.gmra.mrb[0].mxu0 %v348
        %v519 = vpop.f32.mrb[0].mxu0
        %v520 = vadd.f32 0.0, %v519
        %v521 = vpop.f32.mrb[0].mxu0
        %522 = vmatprep.mubr.f32.mxu0 0.0
        %523 = vmatmul.mubr.f32.gmra.mrb[0].mxu0 %v351
        %v524 = vpop.f32.mrb[0].mxu0
        %v525 = vadd.f32 0.0, %v524
        %v526 = vpop.f32.mrb[0].mxu0
        %527 = vmatprep.mubr.f32.mxu0 0.0
        %528 = vmatmul.mubr.f32.gmra.mrb[0].mxu0 %v354
        %v529 = vpop.f32.mrb[0].mxu0
        %v530 = vadd.f32 0.0, %v529
        %v531 = vpop.f32.mrb[0].mxu0
        %532 = vmatprep.mubr.f32.mxu0 0.0
        %533 = vmatmul.mubr.f32.gmra.mrb[0].mxu0 %v357
        %v534 = vpop.f32.mrb[0].mxu0
        %v535 = vadd.f32 0.0, %v534
        %v536 = vpop.f32.mrb[0].mxu0
        %537 = vmatprep.mubr.f32.mxu0 0.0
        %538 = vmatmul.mubr.f32.gmra.mrb[0].mxu0 %v360
        %v539 = vpop.f32.mrb[0].mxu0
        %v540 = vadd.f32 0.0, %v539
        %v541 = vpop.f32.mrb[0].mxu0
        %542 = vmatprep.mubr.f32.mxu0 0.0
        %543 = vmatmul.mubr.f32.gmra.mrb[0].mxu0 %v363
        %v544 = vpop.f32.mrb[0].mxu0
        %v545 = vadd.f32 0.0, %v544
        %v546 = vpop.f32.mrb[0].mxu0
        %547 = vmatprep.mubr.f32.mxu0 0.0
        %548 = vmatmul.mubr.f32.gmra.mrb[0].mxu0 %v366
        %v549 = vpop.f32.mrb[0].mxu0
        %v550 = vadd.f32 0.0, %v549
        %v551 = vpop.f32.mrb[0].mxu0
        %552 = vmatprep.mubr.f32.mxu0 0.0
        %553 = vmatmul.mubr.f32.gmra.mrb[0].mxu0 %v369
        %v554 = vpop.f32.mrb[0].mxu0
        %v555 = vadd.f32 0.0, %v554
        %v556 = vpop.f32.mrb[0].mxu0
        %557 = vmatprep.mubr.f32.mxu0 0.0
        %558 = vmatmul.mubr.f32.gmra.mrb[0].mxu0 %v372
        %v559 = vpop.f32.mrb[0].mxu0
        %v560 = vadd.f32 0.0, %v559
        %v561 = vpop.f32.mrb[0].mxu0
        %562 = vmatprep.mubr.f32.mxu0 0.0
        %563 = vmatmul.mubr.f32.gmra.mrb[0].mxu0 %v375
        %v564 = vpop.f32.mrb[0].mxu0
        %v565 = vadd.f32 0.0, %v564
        %v566 = vpop.f32.mrb[0].mxu0
        %567 = vmatprep.mubr.f32.mxu0 0.0
        %568 = vmatmul.mubr.f32.gmra.mrb[0].mxu0 %v378
        %v569 = vpop.f32.mrb[0].mxu0
        %v570 = vadd.f32 0.0, %v569
        %v571 = vpop.f32.mrb[0].mxu0
        %572 = vmatprep.mubr.f32.mxu0 0.0
        %573 = vmatmul.mubr.f32.gmra.mrb[0].mxu0 %v381
        %v574 = vpop.f32.mrb[0].mxu0
        %v575 = vadd.f32 0.0, %v574
        %v576 = vpop.f32.mrb[0].mxu0
        %577 = vmatprep.mubr.f32.mxu0 0.0
        %578 = vmatmul.mubr.f32.gmra.mrb[0].mxu0 %v384
        %v579 = vpop.f32.mrb[0].mxu0
        %v580 = vadd.f32 0.0, %v579
        %v581 = vpop.f32.mrb[0].mxu0
        %582 = vmatprep.mubr.f32.mxu0 0.0
        %583 = vmatmul.mubr.f32.gmra.mrb[0].mxu0 %v387
        %v584 = vpop.f32.mrb[0].mxu0
        %v585 = vadd.f32 0.0, %v584
        %v586 = vpop.f32.mrb[0].mxu0
        %587 = vmatprep.mubr.f32.mxu0 0.0
        %588 = vmatmul.mubr.f32.gmra.mrb[0].mxu0 %v390
        %v589 = vpop.f32.mrb[0].mxu0
        %v590 = vadd.f32 0.0, %v589
        %v591 = vpop.f32.mrb[0].mxu0
        %592 = vmatprep.mubr.f32.mxu0 0.0
        %593 = vmatmul.mubr.f32.gmra.mrb[0].mxu0 %v393
        %v594 = vpop.f32.mrb[0].mxu0
        %v595 = vadd.f32 0.0, %v594
        %v596 = vpop.f32.mrb[0].mxu0
        %597 = vmatprep.mubr.f32.mxu0 0.0
        %598 = vmatmul.mubr.f32.gmra.mrb[0].mxu0 %v396
        %v599 = vpop.f32.mrb[0].mxu0
        %v600 = vadd.f32 0.0, %v599
        %v601 = vpop.f32.mrb[0].mxu0
        %602 = vmatprep.mubr.f32.mxu0 0.0
        %603 = vmatmul.mubr.f32.gmra.mrb[0].mxu0 %v399
        %v604 = vpop.f32.mrb[0].mxu0
        %v605 = vadd.f32 0.0, %v604
        %v606 = vpop.f32.mrb[0].mxu0
        %607 = vmatprep.mubr.f32.mxu0 0.0
        %608 = vmatmul.mubr.f32.gmra.mrb[0].mxu0 %v402
        %v609 = vpop.f32.mrb[0].mxu0
        %v610 = vadd.f32 0.0, %v609
        %v611 = vpop.f32.mrb[0].mxu0
        %612 = vmatprep.mubr.f32.mxu0 0.0
        %613 = vmatmul.mubr.f32.gmra.mrb[0].mxu0 %v405
        %v614 = vpop.f32.mrb[0].mxu0
        %v615 = vadd.f32 0.0, %v614
        %v616 = vpop.f32.mrb[0].mxu0
        %617 = vmatprep.mubr.f32.mxu0 0.0
        %618 = vmatmul.mubr.f32.gmra.mrb[0].mxu0 %v408
        %v619 = vpop.f32.mrb[0].mxu0
        %v620 = vadd.f32 0.0, %v619
        %v621 = vpop.f32.mrb[0].mxu0
        %622 = vmatprep.mubr.f32.mxu0 0.0
        %623 = vmatmul.mubr.f32.gmra.mrb[0].mxu0 %v411
        %v624 = vpop.f32.mrb[0].mxu0
        %v625 = vadd.f32 0.0, %v624
        %v626 = vpop.f32.mrb[0].mxu0
        %627 = vmatprep.mubr.f32.mxu0 0.0
        %628 = vmatmul.mubr.f32.gmra.mrb[0].mxu0 %v414
        %v629 = vpop.f32.mrb[0].mxu0
        %v630 = vadd.f32 0.0, %v629
        %v631 = vpop.f32.mrb[0].mxu0
        %632 = vmatprep.mubr.f32.mxu0 0.0
        %633 = vmatmul.mubr.f32.gmra.mrb[0].mxu0 %v417
        %v634 = vpop.f32.mrb[0].mxu0
        %v635 = vadd.f32 0.0, %v634
        %v636 = vpop.f32.mrb[0].mxu0
        %637 = vmatprep.mubr.f32.mxu0 0.0
        %638 = vmatmul.mubr.f32.gmra.mrb[0].mxu0 %v420
        %v639 = vpop.f32.mrb[0].mxu0
        %v640 = vadd.f32 0.0, %v639
        %v641 = vpop.f32.mrb[0].mxu0
        %642 = vmatprep.mubr.f32.mxu0 0.0
        %643 = vmatmul.mubr.f32.gmra.mrb[0].mxu0 %v423
        %v644 = vpop.f32.mrb[0].mxu0
        %v645 = vadd.f32 0.0, %v644
        %v646 = vpop.f32.mrb[0].mxu0
        %647 = vmatprep.mubr.f32.mxu0 0.0
        %648 = vmatmul.mubr.f32.gmra.mrb[0].mxu0 %v426
        %v649 = vpop.f32.mrb[0].mxu0
        %v650 = vadd.f32 0.0, %v649
        %v651 = vpop.f32.mrb[0].mxu0
        %652 = vdwg.mxu0
        %v653 = vmax.f32 %v495, 0.0
        %v654 = vmax.f32 %v500, 0.0
        %v655 = vmax.f32 %v505, 0.0
        %v656 = vmax.f32 %v510, 0.0
        %v657 = vmax.f32 %v515, 0.0
        %v658 = vmax.f32 %v520, 0.0
        %v659 = vmax.f32 %v525, 0.0
        %v660 = vmax.f32 %v530, 0.0
        %v661 = vmax.f32 %v535, 0.0
        %v662 = vmax.f32 %v540, 0.0
        %v663 = vmax.f32 %v545, 0.0
        %v664 = vmax.f32 %v550, 0.0
        %v665 = vmax.f32 %v555, 0.0
        %v666 = vmax.f32 %v560, 0.0
        %v667 = vmax.f32 %v565, 0.0
        %v668 = vmax.f32 %v570, 0.0
        %v669 = vmax.f32 %v575, 0.0
        %v670 = vmax.f32 %v580, 0.0
        %v671 = vmax.f32 %v585, 0.0
        %v672 = vmax.f32 %v590, 0.0
        %v673 = vmax.f32 %v595, 0.0
        %v674 = vmax.f32 %v600, 0.0
        %v675 = vmax.f32 %v605, 0.0
        %v676 = vmax.f32 %v610, 0.0
        %v677 = vmax.f32 %v615, 0.0
        %v678 = vmax.f32 %v620, 0.0
        %v679 = vmax.f32 %v625, 0.0
        %v680 = vmax.f32 %v630, 0.0
        %v681 = vmax.f32 %v635, 0.0
        %v682 = vmax.f32 %v640, 0.0
        %683 = vst [vmem:[#allocation2] sm:$0xff] %v653
        %684 = vst [vmem:[#allocation2 + $0x80] sm:$0xff] %v654
        %685 = vst [vmem:[#allocation2 + $0x8] sm:$0xff] %v655
        %686 = vst [vmem:[#allocation2 + $0x88] sm:$0xff] %v656
        %687 = vst [vmem:[#allocation2 + $0x10] sm:$0xff] %v657
        %688 = vst [vmem:[#allocation2 + $0x90] sm:$0xff] %v658
        %689 = vst [vmem:[#allocation2 + $0x18] sm:$0xff] %v659
        %690 = vst [vmem:[#allocation2 + $0x98] sm:$0xff] %v660
        %691 = vst [vmem:[#allocation2 + $0x20] sm:$0xff] %v661
        %692 = vst [vmem:[#allocation2 + $0xa0] sm:$0xff] %v662
        %693 = vst [vmem:[#allocation2 + $0x28] sm:$0xff] %v663
        %694 = vst [vmem:[#allocation2 + $0xa8] sm:$0xff] %v664
        %695 = vst [vmem:[#allocation2 + $0x30] sm:$0xff] %v665
        %696 = vst [vmem:[#allocation2 + $0xb0] sm:$0xff] %v666
        %697 = vst [vmem:[#allocation2 + $0x38] sm:$0xff] %v667
        %698 = vst [vmem:[#allocation2 + $0xb8] sm:$0xff] %v668
        %699 = vst [vmem:[#allocation2 + $0x40] sm:$0xff] %v669
        %700 = vst [vmem:[#allocation2 + $0xc0] sm:$0xff] %v670
        %701 = vst [vmem:[#allocation2 + $0x48] sm:$0xff] %v671
        %702 = vst [vmem:[#allocation2 + $0xc8] sm:$0xff] %v672
        %703 = vst [vmem:[#allocation2 + $0x50] sm:$0xff] %v673
        %704 = vst [vmem:[#allocation2 + $0xd0] sm:$0xff] %v674
        %705 = vst [vmem:[#allocation2 + $0x58] sm:$0xff] %v675
        %706 = vst [vmem:[#allocation2 + $0xd8] sm:$0xff] %v676
        %707 = vst [vmem:[#allocation2 + $0x60] sm:$0xff] %v677
        %708 = vst [vmem:[#allocation2 + $0xe0] sm:$0xff] %v678
        %709 = vst [vmem:[#allocation2 + $0x68] sm:$0xff] %v679
        %710 = vst [vmem:[#allocation2 + $0xe8] sm:$0xff] %v680
        %711 = vst [vmem:[#allocation2 + $0x70] sm:$0xff] %v681
        %712 = vst [vmem:[#allocation2 + $0xf0] sm:$0xff] %v682
        %713 = vst [vmem:[#allocation2 + $0x78] sm:$0xff] %v645
        %714 = vst [vmem:[#allocation2 + $0xf8] sm:$0xff] %v650
        %v715 = vld [vmem:[#allocation2] sm:$0xff]
        %v716 = vld [vmem:[#allocation2 + $0x8] sm:$0xff]
        %v717 = vld [vmem:[#allocation2 + $0x10] sm:$0xff]
        %v718 = vld [vmem:[#allocation2 + $0x18] sm:$0xff]
        %v719 = vld [vmem:[#allocation2 + $0x20] sm:$0xff]
        %v720 = vld [vmem:[#allocation2 + $0x28] sm:$0xff]
        %v721 = vld [vmem:[#allocation2 + $0x30] sm:$0xff]
        %v722 = vld [vmem:[#allocation2 + $0x38] sm:$0xff]
        %v723 = vld [vmem:[#allocation2 + $0x40] sm:$0xff]
        %v724 = vld [vmem:[#allocation2 + $0x48] sm:$0xff]
        %v725 = vld [vmem:[#allocation2 + $0x50] sm:$0xff]
        %v726 = vld [vmem:[#allocation2 + $0x58] sm:$0xff]
        %v727 = vld [vmem:[#allocation2 + $0x60] sm:$0xff]
        %v728 = vld [vmem:[#allocation2 + $0x68] sm:$0xff]
        %v729 = vld [vmem:[#allocation2 + $0x70] sm:$0xff]
        %v730 = vld [vmem:[#allocation2 + $0x78] sm:$0xff]
        %v731 = vld [vmem:[#allocation2 + $0x80] sm:$0xff]
        %v732 = vld [vmem:[#allocation2 + $0x88] sm:$0xff]
        %v733 = vld [vmem:[#allocation2 + $0x90] sm:$0xff]
        %v734 = vld [vmem:[#allocation2 + $0x98] sm:$0xff]
        %v735 = vld [vmem:[#allocation2 + $0xa0] sm:$0xff]
        %v736 = vld [vmem:[#allocation2 + $0xa8] sm:$0xff]
        %v737 = vld [vmem:[#allocation2 + $0xb0] sm:$0xff]
        %v738 = vld [vmem:[#allocation2 + $0xb8] sm:$0xff]
        %v739 = vld [vmem:[#allocation2 + $0xc0] sm:$0xff]
        %v740 = vld [vmem:[#allocation2 + $0xc8] sm:$0xff]
        %v741 = vld [vmem:[#allocation2 + $0xd0] sm:$0xff]
        %v742 = vld [vmem:[#allocation2 + $0xd8] sm:$0xff]
        %v743 = vld [vmem:[#allocation2 + $0xe0] sm:$0xff]
        %v744 = vld [vmem:[#allocation2 + $0xe8] sm:$0xff]
        %v745 = vld [vmem:[#allocation2 + $0xf0] sm:$0xff]
        %v746 = vld [vmem:[#allocation2 + $0xf8] sm:$0xff]
        %v747 = vld [vmem:[#allocation3] sm:$0xff]
        %v748 = vld [vmem:[#allocation3 + $0x8] sm:$0xff]
        %v749 = vld [vmem:[#allocation3 + $0x10] sm:$0xff]
        %v750 = vld [vmem:[#allocation3 + $0x18] sm:$0xff]
        %v751 = vld [vmem:[#allocation3 + $0x20] sm:$0xff]
        %v752 = vld [vmem:[#allocation3 + $0x28] sm:$0xff]
        %v753 = vld [vmem:[#allocation3 + $0x30] sm:$0xff]
        %v754 = vld [vmem:[#allocation3 + $0x38] sm:$0xff]
        %v755 = vld [vmem:[#allocation3 + $0x40] sm:$0xff]
        %v756 = vld [vmem:[#allocation3 + $0x48] sm:$0xff]
        %v757 = vld [vmem:[#allocation3 + $0x50] sm:$0xff]
        %v758 = vld [vmem:[#allocation3 + $0x58] sm:$0xff]
        %v759 = vld [vmem:[#allocation3 + $0x60] sm:$0xff]
        %v760 = vld [vmem:[#allocation3 + $0x68] sm:$0xff]
        %v761 = vld [vmem:[#allocation3 + $0x70] sm:$0xff]
        %v762 = vld [vmem:[#allocation3 + $0x78] sm:$0xff]
        %v763 = vld [vmem:[#allocation3 + $0x80] sm:$0xff]
        %v764 = vld [vmem:[#allocation3 + $0x88] sm:$0xff]
        %v765 = vld [vmem:[#allocation3 + $0x90] sm:$0xff]
        %v766 = vld [vmem:[#allocation3 + $0x98] sm:$0xff]
        %v767 = vld [vmem:[#allocation3 + $0xa0] sm:$0xff]
        %v768 = vld [vmem:[#allocation3 + $0xa8] sm:$0xff]
        %v769 = vld [vmem:[#allocation3 + $0xb0] sm:$0xff]
        %v770 = vld [vmem:[#allocation3 + $0xb8] sm:$0xff]
        %v771 = vld [vmem:[#allocation3 + $0xc0] sm:$0xff]
        %v772 = vld [vmem:[#allocation3 + $0xc8] sm:$0xff]
        %v773 = vld [vmem:[#allocation3 + $0xd0] sm:$0xff]
        %v774 = vld [vmem:[#allocation3 + $0xd8] sm:$0xff]
        %v775 = vld [vmem:[#allocation3 + $0xe0] sm:$0xff]
        %v776 = vld [vmem:[#allocation3 + $0xe8] sm:$0xff]
        %v777 = vld [vmem:[#allocation3 + $0xf0] sm:$0xff]
        %v778 = vld [vmem:[#allocation3 + $0xf8] sm:$0xff]
        %v779 = vld [vmem:[#allocation3 + $0x100] sm:$0xff]
        %v780 = vld [vmem:[#allocation3 + $0x108] sm:$0xff]
        %v781 = vld [vmem:[#allocation3 + $0x110] sm:$0xff]
        %v782 = vld [vmem:[#allocation3 + $0x118] sm:$0xff]
        %v783 = vld [vmem:[#allocation3 + $0x120] sm:$0xff]
        %v784 = vld [vmem:[#allocation3 + $0x128] sm:$0xff]
        %v785 = vld [vmem:[#allocation3 + $0x130] sm:$0xff]
        %v786 = vld [vmem:[#allocation3 + $0x138] sm:$0xff]
        %v787 = vld [vmem:[#allocation3 + $0x140] sm:$0xff]
        %v788 = vld [vmem:[#allocation3 + $0x148] sm:$0xff]
        %v789 = vld [vmem:[#allocation3 + $0x150] sm:$0xff]
        %v790 = vld [vmem:[#allocation3 + $0x158] sm:$0xff]
        %v791 = vld [vmem:[#allocation3 + $0x160] sm:$0xff]
        %v792 = vld [vmem:[#allocation3 + $0x168] sm:$0xff]
        %v793 = vld [vmem:[#allocation3 + $0x170] sm:$0xff]
        %v794 = vld [vmem:[#allocation3 + $0x178] sm:$0xff]
        %v795 = vld [vmem:[#allocation3 + $0x180] sm:$0xff]
        %v796 = vld [vmem:[#allocation3 + $0x188] sm:$0xff]
        %v797 = vld [vmem:[#allocation3 + $0x190] sm:$0xff]
        %v798 = vld [vmem:[#allocation3 + $0x198] sm:$0xff]
        %v799 = vld [vmem:[#allocation3 + $0x1a0] sm:$0xff]
        %v800 = vld [vmem:[#allocation3 + $0x1a8] sm:$0xff]
        %v801 = vld [vmem:[#allocation3 + $0x1b0] sm:$0xff]
        %v802 = vld [vmem:[#allocation3 + $0x1b8] sm:$0xff]
        %v803 = vld [vmem:[#allocation3 + $0x1c0] sm:$0xff]
        %v804 = vld [vmem:[#allocation3 + $0x1c8] sm:$0xff]
        %v805 = vld [vmem:[#allocation3 + $0x1d0] sm:$0xff]
        %v806 = vld [vmem:[#allocation3 + $0x1d8] sm:$0xff]
        %v807 = vld [vmem:[#allocation3 + $0x1e0] sm:$0xff]
        %v808 = vld [vmem:[#allocation3 + $0x1e8] sm:$0xff]
        %v809 = vld [vmem:[#allocation3 + $0x1f0] sm:$0xff]
        %v810 = vld [vmem:[#allocation3 + $0x1f8] sm:$0xff]
        %v811 = vld [vmem:[#allocation3 + $0x200] sm:$0xff]
        %v812 = vld [vmem:[#allocation3 + $0x208] sm:$0xff]
        %v813 = vld [vmem:[#allocation3 + $0x210] sm:$0xff]
        %v814 = vld [vmem:[#allocation3 + $0x218] sm:$0xff]
        %v815 = vld [vmem:[#allocation3 + $0x220] sm:$0xff]
        %v816 = vld [vmem:[#allocation3 + $0x228] sm:$0xff]
        %v817 = vld [vmem:[#allocation3 + $0x230] sm:$0xff]
        %v818 = vld [vmem:[#allocation3 + $0x238] sm:$0xff]
        %v819 = vld [vmem:[#allocation3 + $0x240] sm:$0xff]
        %v820 = vld [vmem:[#allocation3 + $0x248] sm:$0xff]
        %v821 = vld [vmem:[#allocation3 + $0x250] sm:$0xff]
        %v822 = vld [vmem:[#allocation3 + $0x258] sm:$0xff]
        %v823 = vld [vmem:[#allocation3 + $0x260] sm:$0xff]
        %v824 = vld [vmem:[#allocation3 + $0x268] sm:$0xff]
        %v825 = vld [vmem:[#allocation3 + $0x270] sm:$0xff]
        %v826 = vld [vmem:[#allocation3 + $0x278] sm:$0xff]
        %v827 = vld [vmem:[#allocation3 + $0x280] sm:$0xff]
        %v828 = vld [vmem:[#allocation3 + $0x288] sm:$0xff]
        %v829 = vld [vmem:[#allocation3 + $0x290] sm:$0xff]
        %v830 = vld [vmem:[#allocation3 + $0x298] sm:$0xff]
        %v831 = vld [vmem:[#allocation3 + $0x2a0] sm:$0xff]
        %v832 = vld [vmem:[#allocation3 + $0x2a8] sm:$0xff]
        %v833 = vld [vmem:[#allocation3 + $0x2b0] sm:$0xff]
        %v834 = vld [vmem:[#allocation3 + $0x2b8] sm:$0xff]
        %v835 = vld [vmem:[#allocation3 + $0x2c0] sm:$0xff]
        %v836 = vld [vmem:[#allocation3 + $0x2c8] sm:$0xff]
        %v837 = vld [vmem:[#allocation3 + $0x2d0] sm:$0xff]
        %v838 = vld [vmem:[#allocation3 + $0x2d8] sm:$0xff]
        %v839 = vld [vmem:[#allocation3 + $0x2e0] sm:$0xff]
        %v840 = vld [vmem:[#allocation3 + $0x2e8] sm:$0xff]
        %v841 = vld [vmem:[#allocation3 + $0x2f0] sm:$0xff]
        %v842 = vld [vmem:[#allocation3 + $0x2f8] sm:$0xff]
        %v843 = vld [vmem:[#allocation3 + $0x300] sm:$0xff]
        %v844 = vld [vmem:[#allocation3 + $0x308] sm:$0xff]
        %v845 = vld [vmem:[#allocation3 + $0x310] sm:$0xff]
        %v846 = vld [vmem:[#allocation3 + $0x318] sm:$0xff]
        %v847 = vld [vmem:[#allocation3 + $0x320] sm:$0xff]
        %v848 = vld [vmem:[#allocation3 + $0x328] sm:$0xff]
        %v849 = vld [vmem:[#allocation3 + $0x330] sm:$0xff]
        %v850 = vld [vmem:[#allocation3 + $0x338] sm:$0xff]
        %v851 = vld [vmem:[#allocation3 + $0x340] sm:$0xff]
        %v852 = vld [vmem:[#allocation3 + $0x348] sm:$0xff]
        %v853 = vld [vmem:[#allocation3 + $0x350] sm:$0xff]
        %v854 = vld [vmem:[#allocation3 + $0x358] sm:$0xff]
        %v855 = vld [vmem:[#allocation3 + $0x360] sm:$0xff]
        %v856 = vld [vmem:[#allocation3 + $0x368] sm:$0xff]
        %v857 = vld [vmem:[#allocation3 + $0x370] sm:$0xff]
        %v858 = vld [vmem:[#allocation3 + $0x378] sm:$0xff]
        %v859 = vld [vmem:[#allocation3 + $0x380] sm:$0xff]
        %v860 = vld [vmem:[#allocation3 + $0x388] sm:$0xff]
        %v861 = vld [vmem:[#allocation3 + $0x390] sm:$0xff]
        %v862 = vld [vmem:[#allocation3 + $0x398] sm:$0xff]
        %v863 = vld [vmem:[#allocation3 + $0x3a0] sm:$0xff]
        %v864 = vld [vmem:[#allocation3 + $0x3a8] sm:$0xff]
        %v865 = vld [vmem:[#allocation3 + $0x3b0] sm:$0xff]
        %v866 = vld [vmem:[#allocation3 + $0x3b8] sm:$0xff]
        %v867 = vld [vmem:[#allocation3 + $0x3c0] sm:$0xff]
        %v868 = vld [vmem:[#allocation3 + $0x3c8] sm:$0xff]
        %v869 = vld [vmem:[#allocation3 + $0x3d0] sm:$0xff]
        %v870 = vld [vmem:[#allocation3 + $0x3d8] sm:$0xff]
        %v871 = vld [vmem:[#allocation3 + $0x3e0] sm:$0xff]
        %v872 = vld [vmem:[#allocation3 + $0x3e8] sm:$0xff]
        %v873 = vld [vmem:[#allocation3 + $0x3f0] sm:$0xff]
        %v874 = vld [vmem:[#allocation3 + $0x3f8] sm:$0xff]
        %v875 = vld [vmem:[#allocation3 + $0x400] sm:$0xff]
        %v876 = vld [vmem:[#allocation3 + $0x408] sm:$0xff]
        %v877 = vld [vmem:[#allocation3 + $0x410] sm:$0xff]
        %v878 = vld [vmem:[#allocation3 + $0x418] sm:$0xff]
        %v879 = vld [vmem:[#allocation3 + $0x420] sm:$0xff]
        %v880 = vld [vmem:[#allocation3 + $0x428] sm:$0xff]
        %v881 = vld [vmem:[#allocation3 + $0x430] sm:$0xff]
        %v882 = vld [vmem:[#allocation3 + $0x438] sm:$0xff]
        %v883 = vld [vmem:[#allocation3 + $0x440] sm:$0xff]
        %v884 = vld [vmem:[#allocation3 + $0x448] sm:$0xff]
        %v885 = vld [vmem:[#allocation3 + $0x450] sm:$0xff]
        %v886 = vld [vmem:[#allocation3 + $0x458] sm:$0xff]
        %v887 = vld [vmem:[#allocation3 + $0x460] sm:$0xff]
        %v888 = vld [vmem:[#allocation3 + $0x468] sm:$0xff]
        %v889 = vld [vmem:[#allocation3 + $0x470] sm:$0xff]
        %v890 = vld [vmem:[#allocation3 + $0x478] sm:$0xff]
        %v891 = vld [vmem:[#allocation3 + $0x480] sm:$0xff]
        %v892 = vld [vmem:[#allocation3 + $0x488] sm:$0xff]
        %v893 = vld [vmem:[#allocation3 + $0x490] sm:$0xff]
        %v894 = vld [vmem:[#allocation3 + $0x498] sm:$0xff]
        %v895 = vld [vmem:[#allocation3 + $0x4a0] sm:$0xff]
        %v896 = vld [vmem:[#allocation3 + $0x4a8] sm:$0xff]
        %v897 = vld [vmem:[#allocation3 + $0x4b0] sm:$0xff]
        %v898 = vld [vmem:[#allocation3 + $0x4b8] sm:$0xff]
        %v899 = vld [vmem:[#allocation3 + $0x4c0] sm:$0xff]
        %v900 = vld [vmem:[#allocation3 + $0x4c8] sm:$0xff]
        %v901 = vld [vmem:[#allocation3 + $0x4d0] sm:$0xff]
        %v902 = vld [vmem:[#allocation3 + $0x4d8] sm:$0xff]
        %v903 = vld [vmem:[#allocation3 + $0x4e0] sm:$0xff]
        %v904 = vld [vmem:[#allocation3 + $0x4e8] sm:$0xff]
        %v905 = vld [vmem:[#allocation3 + $0x4f0] sm:$0xff]
        %v906 = vld [vmem:[#allocation3 + $0x4f8] sm:$0xff]
        %v907 = vld [vmem:[#allocation3 + $0x500] sm:$0xff]
        %v908 = vld [vmem:[#allocation3 + $0x508] sm:$0xff]
        %v909 = vld [vmem:[#allocation3 + $0x510] sm:$0xff]
        %v910 = vld [vmem:[#allocation3 + $0x518] sm:$0xff]
        %v911 = vld [vmem:[#allocation3 + $0x520] sm:$0xff]
        %v912 = vld [vmem:[#allocation3 + $0x528] sm:$0xff]
        %v913 = vld [vmem:[#allocation3 + $0x530] sm:$0xff]
        %v914 = vld [vmem:[#allocation3 + $0x538] sm:$0xff]
        %v915 = vld [vmem:[#allocation3 + $0x540] sm:$0xff]
        %v916 = vld [vmem:[#allocation3 + $0x548] sm:$0xff]
        %v917 = vld [vmem:[#allocation3 + $0x550] sm:$0xff]
        %v918 = vld [vmem:[#allocation3 + $0x558] sm:$0xff]
        %v919 = vld [vmem:[#allocation3 + $0x560] sm:$0xff]
        %v920 = vld [vmem:[#allocation3 + $0x568] sm:$0xff]
        %v921 = vld [vmem:[#allocation3 + $0x570] sm:$0xff]
        %v922 = vld [vmem:[#allocation3 + $0x578] sm:$0xff]
        %v923 = vld [vmem:[#allocation3 + $0x580] sm:$0xff]
        %v924 = vld [vmem:[#allocation3 + $0x588] sm:$0xff]
        %v925 = vld [vmem:[#allocation3 + $0x590] sm:$0xff]
        %v926 = vld [vmem:[#allocation3 + $0x598] sm:$0xff]
        %v927 = vld [vmem:[#allocation3 + $0x5a0] sm:$0xff]
        %v928 = vld [vmem:[#allocation3 + $0x5a8] sm:$0xff]
        %v929 = vld [vmem:[#allocation3 + $0x5b0] sm:$0xff]
        %v930 = vld [vmem:[#allocation3 + $0x5b8] sm:$0xff]
        %v931 = vld [vmem:[#allocation3 + $0x5c0] sm:$0xff]
        %v932 = vld [vmem:[#allocation3 + $0x5c8] sm:$0xff]
        %v933 = vld [vmem:[#allocation3 + $0x5d0] sm:$0xff]
        %v934 = vld [vmem:[#allocation3 + $0x5d8] sm:$0xff]
        %v935 = vld [vmem:[#allocation3 + $0x5e0] sm:$0xff]
        %v936 = vld [vmem:[#allocation3 + $0x5e8] sm:$0xff]
        %v937 = vld [vmem:[#allocation3 + $0x5f0] sm:$0xff]
        %v938 = vld [vmem:[#allocation3 + $0x5f8] sm:$0xff]
        %v939 = vld [vmem:[#allocation3 + $0x600] sm:$0xff]
        %v940 = vld [vmem:[#allocation3 + $0x608] sm:$0xff]
        %v941 = vld [vmem:[#allocation3 + $0x610] sm:$0xff]
        %v942 = vld [vmem:[#allocation3 + $0x618] sm:$0xff]
        %v943 = vld [vmem:[#allocation3 + $0x620] sm:$0xff]
        %v944 = vld [vmem:[#allocation3 + $0x628] sm:$0xff]
        %v945 = vld [vmem:[#allocation3 + $0x630] sm:$0xff]
        %v946 = vld [vmem:[#allocation3 + $0x638] sm:$0xff]
        %v947 = vld [vmem:[#allocation3 + $0x640] sm:$0xff]
        %v948 = vld [vmem:[#allocation3 + $0x648] sm:$0xff]
        %v949 = vld [vmem:[#allocation3 + $0x650] sm:$0xff]
        %v950 = vld [vmem:[#allocation3 + $0x658] sm:$0xff]
        %v951 = vld [vmem:[#allocation3 + $0x660] sm:$0xff]
        %v952 = vld [vmem:[#allocation3 + $0x668] sm:$0xff]
        %v953 = vld [vmem:[#allocation3 + $0x670] sm:$0xff]
        %v954 = vld [vmem:[#allocation3 + $0x678] sm:$0xff]
        %v955 = vld [vmem:[#allocation3 + $0x680] sm:$0xff]
        %v956 = vld [vmem:[#allocation3 + $0x688] sm:$0xff]
        %v957 = vld [vmem:[#allocation3 + $0x690] sm:$0xff]
        %v958 = vld [vmem:[#allocation3 + $0x698] sm:$0xff]
        %v959 = vld [vmem:[#allocation3 + $0x6a0] sm:$0xff]
        %v960 = vld [vmem:[#allocation3 + $0x6a8] sm:$0xff]
        %v961 = vld [vmem:[#allocation3 + $0x6b0] sm:$0xff]
        %v962 = vld [vmem:[#allocation3 + $0x6b8] sm:$0xff]
        %v963 = vld [vmem:[#allocation3 + $0x6c0] sm:$0xff]
        %v964 = vld [vmem:[#allocation3 + $0x6c8] sm:$0xff]
        %v965 = vld [vmem:[#allocation3 + $0x6d0] sm:$0xff]
        %v966 = vld [vmem:[#allocation3 + $0x6d8] sm:$0xff]
        %v967 = vld [vmem:[#allocation3 + $0x6e0] sm:$0xff]
        %v968 = vld [vmem:[#allocation3 + $0x6e8] sm:$0xff]
        %v969 = vld [vmem:[#allocation3 + $0x6f0] sm:$0xff]
        %v970 = vld [vmem:[#allocation3 + $0x6f8] sm:$0xff]
        %v971 = vld [vmem:[#allocation3 + $0x700] sm:$0xff]
        %v972 = vld [vmem:[#allocation3 + $0x708] sm:$0xff]
        %v973 = vld [vmem:[#allocation3 + $0x710] sm:$0xff]
        %v974 = vld [vmem:[#allocation3 + $0x718] sm:$0xff]
        %v975 = vld [vmem:[#allocation3 + $0x720] sm:$0xff]
        %v976 = vld [vmem:[#allocation3 + $0x728] sm:$0xff]
        %v977 = vld [vmem:[#allocation3 + $0x730] sm:$0xff]
        %v978 = vld [vmem:[#allocation3 + $0x738] sm:$0xff]
        %v979 = vld [vmem:[#allocation3 + $0x740] sm:$0xff]
        %v980 = vld [vmem:[#allocation3 + $0x748] sm:$0xff]
        %v981 = vld [vmem:[#allocation3 + $0x750] sm:$0xff]
        %v982 = vld [vmem:[#allocation3 + $0x758] sm:$0xff]
        %v983 = vld [vmem:[#allocation3 + $0x760] sm:$0xff]
        %v984 = vld [vmem:[#allocation3 + $0x768] sm:$0xff]
        %v985 = vld [vmem:[#allocation3 + $0x770] sm:$0xff]
        %v986 = vld [vmem:[#allocation3 + $0x778] sm:$0xff]
        %v987 = vld [vmem:[#allocation3 + $0x780] sm:$0xff]
        %v988 = vld [vmem:[#allocation3 + $0x788] sm:$0xff]
        %v989 = vld [vmem:[#allocation3 + $0x790] sm:$0xff]
        %v990 = vld [vmem:[#allocation3 + $0x798] sm:$0xff]
        %v991 = vld [vmem:[#allocation3 + $0x7a0] sm:$0xff]
        %v992 = vld [vmem:[#allocation3 + $0x7a8] sm:$0xff]
        %v993 = vld [vmem:[#allocation3 + $0x7b0] sm:$0xff]
        %v994 = vld [vmem:[#allocation3 + $0x7b8] sm:$0xff]
        %v995 = vld [vmem:[#allocation3 + $0x7c0] sm:$0xff]
        %v996 = vld [vmem:[#allocation3 + $0x7c8] sm:$0xff]
        %v997 = vld [vmem:[#allocation3 + $0x7d0] sm:$0xff]
        %v998 = vld [vmem:[#allocation3 + $0x7d8] sm:$0xff]
        %v999 = vld [vmem:[#allocation3 + $0x7e0] sm:$0xff]
        %v1000 = vld [vmem:[#allocation3 + $0x7e8] sm:$0xff]
        %v1001 = vld [vmem:[#allocation3 + $0x7f0] sm:$0xff]
        %v1002 = vld [vmem:[#allocation3 + $0x7f8] sm:$0xff]
        %v1003 = vld [vmem:[%s3] sm:$0x1]
        %v1005 = vlaneseq
        %v1006 = vshrl.u32 %v1005, 7
        %v1007 = vsub.s32 0, %v1006
        %v1008 = vrot.slane %v1003, %v1007
        %1010 = vmatprep.subr.mxu0 0.0
        %1011 = vmatpush1.msra.mxu0 %v747
        %1012 = vmatprep.subr.mxu0 0.0
        %1013 = vmatpush1.msra.mxu0 %v748
        %1014 = vmatprep.subr.mxu0 0.0
        %1015 = vmatpush1.msra.mxu0 %v749
        %1016 = vmatprep.subr.mxu0 0.0
        %1017 = vmatpush1.msra.mxu0 %v750
        %1018 = vmatprep.subr.mxu0 0.0
        %1019 = vmatpush1.msra.mxu0 %v751
        %1020 = vmatprep.subr.mxu0 0.0
        %1021 = vmatpush1.msra.mxu0 %v752
        %1022 = vmatprep.subr.mxu0 0.0
        %1023 = vmatpush1.msra.mxu0 %v753
        %1024 = vmatprep.subr.mxu0 0.0
        %1025 = vmatpush1.msra.mxu0 %v754
        %1026 = vmatprep.subr.mxu0 0.0
        %1027 = vmatpush1.msra.mxu0 %v755
        %1028 = vmatprep.subr.mxu0 0.0
        %1029 = vmatpush1.msra.mxu0 %v756
        %1030 = vmatprep.subr.mxu0 0.0
        %1031 = vmatpush1.msra.mxu0 %v757
        %1032 = vmatprep.subr.mxu0 0.0
        %1033 = vmatpush1.msra.mxu0 %v758
        %1034 = vmatprep.subr.mxu0 0.0
        %1035 = vmatpush1.msra.mxu0 %v759
        %1036 = vmatprep.subr.mxu0 0.0
        %1037 = vmatpush1.msra.mxu0 %v760
        %1038 = vmatprep.subr.mxu0 0.0
        %1039 = vmatpush1.msra.mxu0 %v761
        %1040 = vmatprep.subr.mxu0 0.0
        %1041 = vmatpush1.msra.mxu0 %v762
        %1042 = vmatprep.subr.mxu0 0.0
        %1043 = vmatpush1.msra.mxu0 %v763
        %1044 = vmatprep.subr.mxu0 0.0
        %1045 = vmatpush1.msra.mxu0 %v764
        %1046 = vmatprep.subr.mxu0 0.0
        %1047 = vmatpush1.msra.mxu0 %v765
        %1048 = vmatprep.subr.mxu0 0.0
        %1049 = vmatpush1.msra.mxu0 %v766
        %1050 = vmatprep.subr.mxu0 0.0
        %1051 = vmatpush1.msra.mxu0 %v767
        %1052 = vmatprep.subr.mxu0 0.0
        %1053 = vmatpush1.msra.mxu0 %v768
        %1054 = vmatprep.subr.mxu0 0.0
        %1055 = vmatpush1.msra.mxu0 %v769
        %1056 = vmatprep.subr.mxu0 0.0
        %1057 = vmatpush1.msra.mxu0 %v770
        %1058 = vmatprep.subr.mxu0 0.0
        %1059 = vmatpush1.msra.mxu0 %v771
        %1060 = vmatprep.subr.mxu0 0.0
        %1061 = vmatpush1.msra.mxu0 %v772
        %1062 = vmatprep.subr.mxu0 0.0
        %1063 = vmatpush1.msra.mxu0 %v773
        %1064 = vmatprep.subr.mxu0 0.0
        %1065 = vmatpush1.msra.mxu0 %v774
        %1066 = vmatprep.subr.mxu0 0.0
        %1067 = vmatpush1.msra.mxu0 %v775
        %1068 = vmatprep.subr.mxu0 0.0
        %1069 = vmatpush1.msra.mxu0 %v776
        %1070 = vmatprep.subr.mxu0 0.0
        %1071 = vmatpush1.msra.mxu0 %v777
        %1072 = vmatprep.subr.mxu0 0.0
        %1073 = vmatpush1.msra.mxu0 %v778
        %1074 = vmatprep.mubr.f32.mxu0 %v716
        %1075 = vmatmul.mubr.f32.gmra.mrb[0].mxu0 %v715
        %v1076 = vpop.f32.mrb[0].mxu0
        %v1077 = vadd.f32 %v1008, %v1076
        %v1078 = vpop.f32.mrb[0].mxu0
        %1079 = vmatprep.mubr.f32.mxu0 %v732
        %1080 = vmatmul.mubr.f32.gmra.mrb[0].mxu0 %v731
        %v1081 = vpop.f32.mrb[0].mxu0
        %v1082 = vadd.f32 %v1008, %v1081
        %v1083 = vpop.f32.mrb[0].mxu0
        %1084 = vdwg.mxu0
        %1085 = vmatprep.subr.mxu0 0.0
        %1086 = vmatpush1.msra.mxu0 %v779
        %1087 = vmatprep.subr.mxu0 0.0
        %1088 = vmatpush1.msra.mxu0 %v780
        %1089 = vmatprep.subr.mxu0 0.0
        %1090 = vmatpush1.msra.mxu0 %v781
        %1091 = vmatprep.subr.mxu0 0.0
        %1092 = vmatpush1.msra.mxu0 %v782
        %1093 = vmatprep.subr.mxu0 0.0
        %1094 = vmatpush1.msra.mxu0 %v783
        %1095 = vmatprep.subr.mxu0 0.0
        %1096 = vmatpush1.msra.mxu0 %v784
        %1097 = vmatprep.subr.mxu0 0.0
        %1098 = vmatpush1.msra.mxu0 %v785
        %1099 = vmatprep.subr.mxu0 0.0
        %1100 = vmatpush1.msra.mxu0 %v786
        %1101 = vmatprep.subr.mxu0 0.0
        %1102 = vmatpush1.msra.mxu0 %v787
        %1103 = vmatprep.subr.mxu0 0.0
        %1104 = vmatpush1.msra.mxu0 %v788
        %1105 = vmatprep.subr.mxu0 0.0
        %1106 = vmatpush1.msra.mxu0 %v789
        %1107 = vmatprep.subr.mxu0 0.0
        %1108 = vmatpush1.msra.mxu0 %v790
        %1109 = vmatprep.subr.mxu0 0.0
        %1110 = vmatpush1.msra.mxu0 %v791
        %1111 = vmatprep.subr.mxu0 0.0
        %1112 = vmatpush1.msra.mxu0 %v792
        %1113 = vmatprep.subr.mxu0 0.0
        %1114 = vmatpush1.msra.mxu0 %v793
        %1115 = vmatprep.subr.mxu0 0.0
        %1116 = vmatpush1.msra.mxu0 %v794
        %1117 = vmatprep.subr.mxu0 0.0
        %1118 = vmatpush1.msra.mxu0 %v795
        %1119 = vmatprep.subr.mxu0 0.0
        %1120 = vmatpush1.msra.mxu0 %v796
        %1121 = vmatprep.subr.mxu0 0.0
        %1122 = vmatpush1.msra.mxu0 %v797
        %1123 = vmatprep.subr.mxu0 0.0
        %1124 = vmatpush1.msra.mxu0 %v798
        %1125 = vmatprep.subr.mxu0 0.0
        %1126 = vmatpush1.msra.mxu0 %v799
        %1127 = vmatprep.subr.mxu0 0.0
        %1128 = vmatpush1.msra.mxu0 %v800
        %1129 = vmatprep.subr.mxu0 0.0
        %1130 = vmatpush1.msra.mxu0 %v801
        %1131 = vmatprep.subr.mxu0 0.0
        %1132 = vmatpush1.msra.mxu0 %v802
        %1133 = vmatprep.subr.mxu0 0.0
        %1134 = vmatpush1.msra.mxu0 %v803
        %1135 = vmatprep.subr.mxu0 0.0
        %1136 = vmatpush1.msra.mxu0 %v804
        %1137 = vmatprep.subr.mxu0 0.0
        %1138 = vmatpush1.msra.mxu0 %v805
        %1139 = vmatprep.subr.mxu0 0.0
        %1140 = vmatpush1.msra.mxu0 %v806
        %1141 = vmatprep.subr.mxu0 0.0
        %1142 = vmatpush1.msra.mxu0 %v807
        %1143 = vmatprep.subr.mxu0 0.0
        %1144 = vmatpush1.msra.mxu0 %v808
        %1145 = vmatprep.subr.mxu0 0.0
        %1146 = vmatpush1.msra.mxu0 %v809
        %1147 = vmatprep.subr.mxu0 0.0
        %1148 = vmatpush1.msra.mxu0 %v810
        %1149 = vmatprep.mubr.f32.mxu0 %v718
        %1150 = vmatmul.mubr.f32.gmra.mrb[0].mxu0 %v717
        %v1151 = vpop.f32.mrb[0].mxu0
        %v1152 = vadd.f32 %v1077, %v1151
        %v1153 = vpop.f32.mrb[0].mxu0
        %1154 = vmatprep.mubr.f32.mxu0 %v734
        %1155 = vmatmul.mubr.f32.gmra.mrb[0].mxu0 %v733
        %v1156 = vpop.f32.mrb[0].mxu0
        %v1157 = vadd.f32 %v1082, %v1156
        %v1158 = vpop.f32.mrb[0].mxu0
        %1159 = vdwg.mxu0
        %1160 = vmatprep.subr.mxu0 0.0
        %1161 = vmatpush1.msra.mxu0 %v811
        %1162 = vmatprep.subr.mxu0 0.0
        %1163 = vmatpush1.msra.mxu0 %v812
        %1164 = vmatprep.subr.mxu0 0.0
        %1165 = vmatpush1.msra.mxu0 %v813
        %1166 = vmatprep.subr.mxu0 0.0
        %1167 = vmatpush1.msra.mxu0 %v814
        %1168 = vmatprep.subr.mxu0 0.0
        %1169 = vmatpush1.msra.mxu0 %v815
        %1170 = vmatprep.subr.mxu0 0.0
        %1171 = vmatpush1.msra.mxu0 %v816
        %1172 = vmatprep.subr.mxu0 0.0
        %1173 = vmatpush1.msra.mxu0 %v817
        %1174 = vmatprep.subr.mxu0 0.0
        %1175 = vmatpush1.msra.mxu0 %v818
        %1176 = vmatprep.subr.mxu0 0.0
        %1177 = vmatpush1.msra.mxu0 %v819
        %1178 = vmatprep.subr.mxu0 0.0
        %1179 = vmatpush1.msra.mxu0 %v820
        %1180 = vmatprep.subr.mxu0 0.0
        %1181 = vmatpush1.msra.mxu0 %v821
        %1182 = vmatprep.subr.mxu0 0.0
        %1183 = vmatpush1.msra.mxu0 %v822
        %1184 = vmatprep.subr.mxu0 0.0
        %1185 = vmatpush1.msra.mxu0 %v823
        %1186 = vmatprep.subr.mxu0 0.0
        %1187 = vmatpush1.msra.mxu0 %v824
        %1188 = vmatprep.subr.mxu0 0.0
        %1189 = vmatpush1.msra.mxu0 %v825
        %1190 = vmatprep.subr.mxu0 0.0
        %1191 = vmatpush1.msra.mxu0 %v826
        %1192 = vmatprep.subr.mxu0 0.0
        %1193 = vmatpush1.msra.mxu0 %v827
        %1194 = vmatprep.subr.mxu0 0.0
        %1195 = vmatpush1.msra.mxu0 %v828
        %1196 = vmatprep.subr.mxu0 0.0
        %1197 = vmatpush1.msra.mxu0 %v829
        %1198 = vmatprep.subr.mxu0 0.0
        %1199 = vmatpush1.msra.mxu0 %v830
        %1200 = vmatprep.subr.mxu0 0.0
        %1201 = vmatpush1.msra.mxu0 %v831
        %1202 = vmatprep.subr.mxu0 0.0
        %1203 = vmatpush1.msra.mxu0 %v832
        %1204 = vmatprep.subr.mxu0 0.0
        %1205 = vmatpush1.msra.mxu0 %v833
        %1206 = vmatprep.subr.mxu0 0.0
        %1207 = vmatpush1.msra.mxu0 %v834
        %1208 = vmatprep.subr.mxu0 0.0
        %1209 = vmatpush1.msra.mxu0 %v835
        %1210 = vmatprep.subr.mxu0 0.0
        %1211 = vmatpush1.msra.mxu0 %v836
        %1212 = vmatprep.subr.mxu0 0.0
        %1213 = vmatpush1.msra.mxu0 %v837
        %1214 = vmatprep.subr.mxu0 0.0
        %1215 = vmatpush1.msra.mxu0 %v838
        %1216 = vmatprep.subr.mxu0 0.0
        %1217 = vmatpush1.msra.mxu0 %v839
        %1218 = vmatprep.subr.mxu0 0.0
        %1219 = vmatpush1.msra.mxu0 %v840
        %1220 = vmatprep.subr.mxu0 0.0
        %1221 = vmatpush1.msra.mxu0 %v841
        %1222 = vmatprep.subr.mxu0 0.0
        %1223 = vmatpush1.msra.mxu0 %v842
        %1224 = vmatprep.mubr.f32.mxu0 %v720
        %1225 = vmatmul.mubr.f32.gmra.mrb[0].mxu0 %v719
        %v1226 = vpop.f32.mrb[0].mxu0
        %v1227 = vadd.f32 %v1152, %v1226
        %v1228 = vpop.f32.mrb[0].mxu0
        %1229 = vmatprep.mubr.f32.mxu0 %v736
        %1230 = vmatmul.mubr.f32.gmra.mrb[0].mxu0 %v735
        %v1231 = vpop.f32.mrb[0].mxu0
        %v1232 = vadd.f32 %v1157, %v1231
        %v1233 = vpop.f32.mrb[0].mxu0
        %1234 = vdwg.mxu0
        %1235 = vmatprep.subr.mxu0 0.0
        %1236 = vmatpush1.msra.mxu0 %v843
        %1237 = vmatprep.subr.mxu0 0.0
        %1238 = vmatpush1.msra.mxu0 %v844
        %1239 = vmatprep.subr.mxu0 0.0
        %1240 = vmatpush1.msra.mxu0 %v845
        %1241 = vmatprep.subr.mxu0 0.0
        %1242 = vmatpush1.msra.mxu0 %v846
        %1243 = vmatprep.subr.mxu0 0.0
        %1244 = vmatpush1.msra.mxu0 %v847
        %1245 = vmatprep.subr.mxu0 0.0
        %1246 = vmatpush1.msra.mxu0 %v848
        %1247 = vmatprep.subr.mxu0 0.0
        %1248 = vmatpush1.msra.mxu0 %v849
        %1249 = vmatprep.subr.mxu0 0.0
        %1250 = vmatpush1.msra.mxu0 %v850
        %1251 = vmatprep.subr.mxu0 0.0
        %1252 = vmatpush1.msra.mxu0 %v851
        %1253 = vmatprep.subr.mxu0 0.0
        %1254 = vmatpush1.msra.mxu0 %v852
        %1255 = vmatprep.subr.mxu0 0.0
        %1256 = vmatpush1.msra.mxu0 %v853
        %1257 = vmatprep.subr.mxu0 0.0
        %1258 = vmatpush1.msra.mxu0 %v854
        %1259 = vmatprep.subr.mxu0 0.0
        %1260 = vmatpush1.msra.mxu0 %v855
        %1261 = vmatprep.subr.mxu0 0.0
        %1262 = vmatpush1.msra.mxu0 %v856
        %1263 = vmatprep.subr.mxu0 0.0
        %1264 = vmatpush1.msra.mxu0 %v857
        %1265 = vmatprep.subr.mxu0 0.0
        %1266 = vmatpush1.msra.mxu0 %v858
        %1267 = vmatprep.subr.mxu0 0.0
        %1268 = vmatpush1.msra.mxu0 %v859
        %1269 = vmatprep.subr.mxu0 0.0
        %1270 = vmatpush1.msra.mxu0 %v860
        %1271 = vmatprep.subr.mxu0 0.0
        %1272 = vmatpush1.msra.mxu0 %v861
        %1273 = vmatprep.subr.mxu0 0.0
        %1274 = vmatpush1.msra.mxu0 %v862
        %1275 = vmatprep.subr.mxu0 0.0
        %1276 = vmatpush1.msra.mxu0 %v863
        %1277 = vmatprep.subr.mxu0 0.0
        %1278 = vmatpush1.msra.mxu0 %v864
        %1279 = vmatprep.subr.mxu0 0.0
        %1280 = vmatpush1.msra.mxu0 %v865
        %1281 = vmatprep.subr.mxu0 0.0
        %1282 = vmatpush1.msra.mxu0 %v866
        %1283 = vmatprep.subr.mxu0 0.0
        %1284 = vmatpush1.msra.mxu0 %v867
        %1285 = vmatprep.subr.mxu0 0.0
        %1286 = vmatpush1.msra.mxu0 %v868
        %1287 = vmatprep.subr.mxu0 0.0
        %1288 = vmatpush1.msra.mxu0 %v869
        %1289 = vmatprep.subr.mxu0 0.0
        %1290 = vmatpush1.msra.mxu0 %v870
        %1291 = vmatprep.subr.mxu0 0.0
        %1292 = vmatpush1.msra.mxu0 %v871
        %1293 = vmatprep.subr.mxu0 0.0
        %1294 = vmatpush1.msra.mxu0 %v872
        %1295 = vmatprep.subr.mxu0 0.0
        %1296 = vmatpush1.msra.mxu0 %v873
        %1297 = vmatprep.subr.mxu0 0.0
        %1298 = vmatpush1.msra.mxu0 %v874
        %1299 = vmatprep.mubr.f32.mxu0 %v722
        %1300 = vmatmul.mubr.f32.gmra.mrb[0].mxu0 %v721
        %v1301 = vpop.f32.mrb[0].mxu0
        %v1302 = vadd.f32 %v1227, %v1301
        %v1303 = vpop.f32.mrb[0].mxu0
        %1304 = vmatprep.mubr.f32.mxu0 %v738
        %1305 = vmatmul.mubr.f32.gmra.mrb[0].mxu0 %v737
        %v1306 = vpop.f32.mrb[0].mxu0
        %v1307 = vadd.f32 %v1232, %v1306
        %v1308 = vpop.f32.mrb[0].mxu0
        %1309 = vdwg.mxu0
        %1310 = vmatprep.subr.mxu0 0.0
        %1311 = vmatpush1.msra.mxu0 %v875
        %1312 = vmatprep.subr.mxu0 0.0
        %1313 = vmatpush1.msra.mxu0 %v876
        %1314 = vmatprep.subr.mxu0 0.0
        %1315 = vmatpush1.msra.mxu0 %v877
        %1316 = vmatprep.subr.mxu0 0.0
        %1317 = vmatpush1.msra.mxu0 %v878
        %1318 = vmatprep.subr.mxu0 0.0
        %1319 = vmatpush1.msra.mxu0 %v879
        %1320 = vmatprep.subr.mxu0 0.0
        %1321 = vmatpush1.msra.mxu0 %v880
        %1322 = vmatprep.subr.mxu0 0.0
        %1323 = vmatpush1.msra.mxu0 %v881
        %1324 = vmatprep.subr.mxu0 0.0
        %1325 = vmatpush1.msra.mxu0 %v882
        %1326 = vmatprep.subr.mxu0 0.0
        %1327 = vmatpush1.msra.mxu0 %v883
        %1328 = vmatprep.subr.mxu0 0.0
        %1329 = vmatpush1.msra.mxu0 %v884
        %1330 = vmatprep.subr.mxu0 0.0
        %1331 = vmatpush1.msra.mxu0 %v885
        %1332 = vmatprep.subr.mxu0 0.0
        %1333 = vmatpush1.msra.mxu0 %v886
        %1334 = vmatprep.subr.mxu0 0.0
        %1335 = vmatpush1.msra.mxu0 %v887
        %1336 = vmatprep.subr.mxu0 0.0
        %1337 = vmatpush1.msra.mxu0 %v888
        %1338 = vmatprep.subr.mxu0 0.0
        %1339 = vmatpush1.msra.mxu0 %v889
        %1340 = vmatprep.subr.mxu0 0.0
        %1341 = vmatpush1.msra.mxu0 %v890
        %1342 = vmatprep.subr.mxu0 0.0
        %1343 = vmatpush1.msra.mxu0 %v891
        %1344 = vmatprep.subr.mxu0 0.0
        %1345 = vmatpush1.msra.mxu0 %v892
        %1346 = vmatprep.subr.mxu0 0.0
        %1347 = vmatpush1.msra.mxu0 %v893
        %1348 = vmatprep.subr.mxu0 0.0
        %1349 = vmatpush1.msra.mxu0 %v894
        %1350 = vmatprep.subr.mxu0 0.0
        %1351 = vmatpush1.msra.mxu0 %v895
        %1352 = vmatprep.subr.mxu0 0.0
        %1353 = vmatpush1.msra.mxu0 %v896
        %1354 = vmatprep.subr.mxu0 0.0
        %1355 = vmatpush1.msra.mxu0 %v897
        %1356 = vmatprep.subr.mxu0 0.0
        %1357 = vmatpush1.msra.mxu0 %v898
        %1358 = vmatprep.subr.mxu0 0.0
        %1359 = vmatpush1.msra.mxu0 %v899
        %1360 = vmatprep.subr.mxu0 0.0
        %1361 = vmatpush1.msra.mxu0 %v900
        %1362 = vmatprep.subr.mxu0 0.0
        %1363 = vmatpush1.msra.mxu0 %v901
        %1364 = vmatprep.subr.mxu0 0.0
        %1365 = vmatpush1.msra.mxu0 %v902
        %1366 = vmatprep.subr.mxu0 0.0
        %1367 = vmatpush1.msra.mxu0 %v903
        %1368 = vmatprep.subr.mxu0 0.0
        %1369 = vmatpush1.msra.mxu0 %v904
        %1370 = vmatprep.subr.mxu0 0.0
        %1371 = vmatpush1.msra.mxu0 %v905
        %1372 = vmatprep.subr.mxu0 0.0
        %1373 = vmatpush1.msra.mxu0 %v906
        %1374 = vmatprep.mubr.f32.mxu0 %v724
        %1375 = vmatmul.mubr.f32.gmra.mrb[0].mxu0 %v723
        %v1376 = vpop.f32.mrb[0].mxu0
        %v1377 = vadd.f32 %v1302, %v1376
        %v1378 = vpop.f32.mrb[0].mxu0
        %1379 = vmatprep.mubr.f32.mxu0 %v740
        %1380 = vmatmul.mubr.f32.gmra.mrb[0].mxu0 %v739
        %v1381 = vpop.f32.mrb[0].mxu0
        %v1382 = vadd.f32 %v1307, %v1381
        %v1383 = vpop.f32.mrb[0].mxu0
        %1384 = vdwg.mxu0
        %1385 = vmatprep.subr.mxu0 0.0
        %1386 = vmatpush1.msra.mxu0 %v907
        %1387 = vmatprep.subr.mxu0 0.0
        %1388 = vmatpush1.msra.mxu0 %v908
        %1389 = vmatprep.subr.mxu0 0.0
        %1390 = vmatpush1.msra.mxu0 %v909
        %1391 = vmatprep.subr.mxu0 0.0
        %1392 = vmatpush1.msra.mxu0 %v910
        %1393 = vmatprep.subr.mxu0 0.0
        %1394 = vmatpush1.msra.mxu0 %v911
        %1395 = vmatprep.subr.mxu0 0.0
        %1396 = vmatpush1.msra.mxu0 %v912
        %1397 = vmatprep.subr.mxu0 0.0
        %1398 = vmatpush1.msra.mxu0 %v913
        %1399 = vmatprep.subr.mxu0 0.0
        %1400 = vmatpush1.msra.mxu0 %v914
        %1401 = vmatprep.subr.mxu0 0.0
        %1402 = vmatpush1.msra.mxu0 %v915
        %1403 = vmatprep.subr.mxu0 0.0
        %1404 = vmatpush1.msra.mxu0 %v916
        %1405 = vmatprep.subr.mxu0 0.0
        %1406 = vmatpush1.msra.mxu0 %v917
        %1407 = vmatprep.subr.mxu0 0.0
        %1408 = vmatpush1.msra.mxu0 %v918
        %1409 = vmatprep.subr.mxu0 0.0
        %1410 = vmatpush1.msra.mxu0 %v919
        %1411 = vmatprep.subr.mxu0 0.0
        %1412 = vmatpush1.msra.mxu0 %v920
        %1413 = vmatprep.subr.mxu0 0.0
        %1414 = vmatpush1.msra.mxu0 %v921
        %1415 = vmatprep.subr.mxu0 0.0
        %1416 = vmatpush1.msra.mxu0 %v922
        %1417 = vmatprep.subr.mxu0 0.0
        %1418 = vmatpush1.msra.mxu0 %v923
        %1419 = vmatprep.subr.mxu0 0.0
        %1420 = vmatpush1.msra.mxu0 %v924
        %1421 = vmatprep.subr.mxu0 0.0
        %1422 = vmatpush1.msra.mxu0 %v925
        %1423 = vmatprep.subr.mxu0 0.0
        %1424 = vmatpush1.msra.mxu0 %v926
        %1425 = vmatprep.subr.mxu0 0.0
        %1426 = vmatpush1.msra.mxu0 %v927
        %1427 = vmatprep.subr.mxu0 0.0
        %1428 = vmatpush1.msra.mxu0 %v928
        %1429 = vmatprep.subr.mxu0 0.0
        %1430 = vmatpush1.msra.mxu0 %v929
        %1431 = vmatprep.subr.mxu0 0.0
        %1432 = vmatpush1.msra.mxu0 %v930
        %1433 = vmatprep.subr.mxu0 0.0
        %1434 = vmatpush1.msra.mxu0 %v931
        %1435 = vmatprep.subr.mxu0 0.0
        %1436 = vmatpush1.msra.mxu0 %v932
        %1437 = vmatprep.subr.mxu0 0.0
        %1438 = vmatpush1.msra.mxu0 %v933
        %1439 = vmatprep.subr.mxu0 0.0
        %1440 = vmatpush1.msra.mxu0 %v934
        %1441 = vmatprep.subr.mxu0 0.0
        %1442 = vmatpush1.msra.mxu0 %v935
        %1443 = vmatprep.subr.mxu0 0.0
        %1444 = vmatpush1.msra.mxu0 %v936
        %1445 = vmatprep.subr.mxu0 0.0
        %1446 = vmatpush1.msra.mxu0 %v937
        %1447 = vmatprep.subr.mxu0 0.0
        %1448 = vmatpush1.msra.mxu0 %v938
        %1449 = vmatprep.mubr.f32.mxu0 %v726
        %1450 = vmatmul.mubr.f32.gmra.mrb[0].mxu0 %v725
        %v1451 = vpop.f32.mrb[0].mxu0
        %v1452 = vadd.f32 %v1377, %v1451
        %v1453 = vpop.f32.mrb[0].mxu0
        %1454 = vmatprep.mubr.f32.mxu0 %v742
        %1455 = vmatmul.mubr.f32.gmra.mrb[0].mxu0 %v741
        %v1456 = vpop.f32.mrb[0].mxu0
        %v1457 = vadd.f32 %v1382, %v1456
        %v1458 = vpop.f32.mrb[0].mxu0
        %1459 = vdwg.mxu0
        %1460 = vmatprep.subr.mxu0 0.0
        %1461 = vmatpush1.msra.mxu0 %v939
        %1462 = vmatprep.subr.mxu0 0.0
        %1463 = vmatpush1.msra.mxu0 %v940
        %1464 = vmatprep.subr.mxu0 0.0
        %1465 = vmatpush1.msra.mxu0 %v941
        %1466 = vmatprep.subr.mxu0 0.0
        %1467 = vmatpush1.msra.mxu0 %v942
        %1468 = vmatprep.subr.mxu0 0.0
        %1469 = vmatpush1.msra.mxu0 %v943
        %1470 = vmatprep.subr.mxu0 0.0
        %1471 = vmatpush1.msra.mxu0 %v944
        %1472 = vmatprep.subr.mxu0 0.0
        %1473 = vmatpush1.msra.mxu0 %v945
        %1474 = vmatprep.subr.mxu0 0.0
        %1475 = vmatpush1.msra.mxu0 %v946
        %1476 = vmatprep.subr.mxu0 0.0
        %1477 = vmatpush1.msra.mxu0 %v947
        %1478 = vmatprep.subr.mxu0 0.0
        %1479 = vmatpush1.msra.mxu0 %v948
        %1480 = vmatprep.subr.mxu0 0.0
        %1481 = vmatpush1.msra.mxu0 %v949
        %1482 = vmatprep.subr.mxu0 0.0
        %1483 = vmatpush1.msra.mxu0 %v950
        %1484 = vmatprep.subr.mxu0 0.0
        %1485 = vmatpush1.msra.mxu0 %v951
        %1486 = vmatprep.subr.mxu0 0.0
        %1487 = vmatpush1.msra.mxu0 %v952
        %1488 = vmatprep.subr.mxu0 0.0
        %1489 = vmatpush1.msra.mxu0 %v953
        %1490 = vmatprep.subr.mxu0 0.0
        %1491 = vmatpush1.msra.mxu0 %v954
        %1492 = vmatprep.subr.mxu0 0.0
        %1493 = vmatpush1.msra.mxu0 %v955
        %1494 = vmatprep.subr.mxu0 0.0
        %1495 = vmatpush1.msra.mxu0 %v956
        %1496 = vmatprep.subr.mxu0 0.0
        %1497 = vmatpush1.msra.mxu0 %v957
        %1498 = vmatprep.subr.mxu0 0.0
        %1499 = vmatpush1.msra.mxu0 %v958
        %1500 = vmatprep.subr.mxu0 0.0
        %1501 = vmatpush1.msra.mxu0 %v959
        %1502 = vmatprep.subr.mxu0 0.0
        %1503 = vmatpush1.msra.mxu0 %v960
        %1504 = vmatprep.subr.mxu0 0.0
        %1505 = vmatpush1.msra.mxu0 %v961
        %1506 = vmatprep.subr.mxu0 0.0
        %1507 = vmatpush1.msra.mxu0 %v962
        %1508 = vmatprep.subr.mxu0 0.0
        %1509 = vmatpush1.msra.mxu0 %v963
        %1510 = vmatprep.subr.mxu0 0.0
        %1511 = vmatpush1.msra.mxu0 %v964
        %1512 = vmatprep.subr.mxu0 0.0
        %1513 = vmatpush1.msra.mxu0 %v965
        %1514 = vmatprep.subr.mxu0 0.0
        %1515 = vmatpush1.msra.mxu0 %v966
        %1516 = vmatprep.subr.mxu0 0.0
        %1517 = vmatpush1.msra.mxu0 %v967
        %1518 = vmatprep.subr.mxu0 0.0
        %1519 = vmatpush1.msra.mxu0 %v968
        %1520 = vmatprep.subr.mxu0 0.0
        %1521 = vmatpush1.msra.mxu0 %v969
        %1522 = vmatprep.subr.mxu0 0.0
        %1523 = vmatpush1.msra.mxu0 %v970
        %1524 = vmatprep.mubr.f32.mxu0 %v728
        %1525 = vmatmul.mubr.f32.gmra.mrb[0].mxu0 %v727
        %v1526 = vpop.f32.mrb[0].mxu0
        %v1527 = vadd.f32 %v1452, %v1526
        %v1528 = vpop.f32.mrb[0].mxu0
        %1529 = vmatprep.mubr.f32.mxu0 %v744
        %1530 = vmatmul.mubr.f32.gmra.mrb[0].mxu0 %v743
        %v1531 = vpop.f32.mrb[0].mxu0
        %v1532 = vadd.f32 %v1457, %v1531
        %v1533 = vpop.f32.mrb[0].mxu0
        %1534 = vdwg.mxu0
        %1535 = vmatprep.subr.mxu0 0.0
        %1536 = vmatpush1.msra.mxu0 %v971
        %1537 = vmatprep.subr.mxu0 0.0
        %1538 = vmatpush1.msra.mxu0 %v972
        %1539 = vmatprep.subr.mxu0 0.0
        %1540 = vmatpush1.msra.mxu0 %v973
        %1541 = vmatprep.subr.mxu0 0.0
        %1542 = vmatpush1.msra.mxu0 %v974
        %1543 = vmatprep.subr.mxu0 0.0
        %1544 = vmatpush1.msra.mxu0 %v975
        %1545 = vmatprep.subr.mxu0 0.0
        %1546 = vmatpush1.msra.mxu0 %v976
        %1547 = vmatprep.subr.mxu0 0.0
        %1548 = vmatpush1.msra.mxu0 %v977
        %1549 = vmatprep.subr.mxu0 0.0
        %1550 = vmatpush1.msra.mxu0 %v978
        %1551 = vmatprep.subr.mxu0 0.0
        %1552 = vmatpush1.msra.mxu0 %v979
        %1553 = vmatprep.subr.mxu0 0.0
        %1554 = vmatpush1.msra.mxu0 %v980
        %1555 = vmatprep.subr.mxu0 0.0
        %1556 = vmatpush1.msra.mxu0 %v981
        %1557 = vmatprep.subr.mxu0 0.0
        %1558 = vmatpush1.msra.mxu0 %v982
        %1559 = vmatprep.subr.mxu0 0.0
        %1560 = vmatpush1.msra.mxu0 %v983
        %1561 = vmatprep.subr.mxu0 0.0
        %1562 = vmatpush1.msra.mxu0 %v984
        %1563 = vmatprep.subr.mxu0 0.0
        %1564 = vmatpush1.msra.mxu0 %v985
        %1565 = vmatprep.subr.mxu0 0.0
        %1566 = vmatpush1.msra.mxu0 %v986
        %1567 = vmatprep.subr.mxu0 0.0
        %1568 = vmatpush1.msra.mxu0 %v987
        %1569 = vmatprep.subr.mxu0 0.0
        %1570 = vmatpush1.msra.mxu0 %v988
        %1571 = vmatprep.subr.mxu0 0.0
        %1572 = vmatpush1.msra.mxu0 %v989
        %1573 = vmatprep.subr.mxu0 0.0
        %1574 = vmatpush1.msra.mxu0 %v990
        %1575 = vmatprep.subr.mxu0 0.0
        %1576 = vmatpush1.msra.mxu0 %v991
        %1577 = vmatprep.subr.mxu0 0.0
        %1578 = vmatpush1.msra.mxu0 %v992
        %1579 = vmatprep.subr.mxu0 0.0
        %1580 = vmatpush1.msra.mxu0 %v993
        %1581 = vmatprep.subr.mxu0 0.0
        %1582 = vmatpush1.msra.mxu0 %v994
        %1583 = vmatprep.subr.mxu0 0.0
        %1584 = vmatpush1.msra.mxu0 %v995
        %1585 = vmatprep.subr.mxu0 0.0
        %1586 = vmatpush1.msra.mxu0 %v996
        %1587 = vmatprep.subr.mxu0 0.0
        %1588 = vmatpush1.msra.mxu0 %v997
        %1589 = vmatprep.subr.mxu0 0.0
        %1590 = vmatpush1.msra.mxu0 %v998
        %1591 = vmatprep.subr.mxu0 0.0
        %1592 = vmatpush1.msra.mxu0 %v999
        %1593 = vmatprep.subr.mxu0 0.0
        %1594 = vmatpush1.msra.mxu0 %v1000
        %1595 = vmatprep.subr.mxu0 0.0
        %1596 = vmatpush1.msra.mxu0 %v1001
        %1597 = vmatprep.subr.mxu0 0.0
        %1598 = vmatpush1.msra.mxu0 %v1002
        %1599 = vmatprep.mubr.f32.mxu0 %v730
        %1600 = vmatmul.mubr.f32.gmra.mrb[0].mxu0 %v729
        %v1601 = vpop.f32.mrb[0].mxu0
        %v1602 = vadd.f32 %v1527, %v1601
        %v1603 = vpop.f32.mrb[0].mxu0
        %1604 = vmatprep.mubr.f32.mxu0 %v746
        %1605 = vmatmul.mubr.f32.gmra.mrb[0].mxu0 %v745
        %v1606 = vpop.f32.mrb[0].mxu0
        %v1607 = vadd.f32 %v1532, %v1606
        %v1608 = vpop.f32.mrb[0].mxu0
        %1609 = vdwg.mxu0
        %v1610 = vmax.f32 %v1602, 0.0
        %v1611 = vmax.f32 %v1607, 0.0
        %v1612 = vld [vmem:[%s4] sm:$0xff]
        %v1613 = vld [vmem:[%s4 + $0x8] sm:$0xff]
        %v1614 = vld [vmem:[%s4 + $0x10] sm:$0xff]
        %v1615 = vld [vmem:[%s4 + $0x18] sm:$0xff]
        %v1616 = vld [vmem:[%s4 + $0x20] sm:$0xff]
        %v1617 = vld [vmem:[%s4 + $0x28] sm:$0xff]
        %v1618 = vld [vmem:[%s4 + $0x30] sm:$0xff]
        %v1619 = vld [vmem:[%s4 + $0x38] sm:$0xff]
        %v1620 = vld [vmem:[%s4 + $0x40] sm:$0xff]
        %v1621 = vld [vmem:[%s4 + $0x48] sm:$0xff]
        %v1622 = vld [vmem:[%s4 + $0x50] sm:$0xff]
        %v1623 = vld [vmem:[%s4 + $0x58] sm:$0xff]
        %v1624 = vld [vmem:[%s4 + $0x60] sm:$0xff]
        %v1625 = vld [vmem:[%s4 + $0x68] sm:$0xff]
        %v1626 = vld [vmem:[%s4 + $0x70] sm:$0xff]
        %v1627 = vld [vmem:[%s4 + $0x78] sm:$0xff]
        %v1628 = vld [vmem:[%s5] sm:$0x1]
        %v1630 = vlaneseq
        %v1631 = vshrl.u32 %v1630, 7
        %v1632 = vsub.s32 0, %v1631
        %v1633 = vrot.slane %v1628, %v1632
        %1635 = vmatprep.subr.mxu0 0.0
        %1636 = vmatpush1.msra.mxu0 %v1612
        %1637 = vmatprep.subr.mxu0 0.0
        %1638 = vmatpush1.msra.mxu0 %v1613
        %1639 = vmatprep.subr.mxu0 0.0
        %1640 = vmatpush1.msra.mxu0 %v1614
        %1641 = vmatprep.subr.mxu0 0.0
        %1642 = vmatpush1.msra.mxu0 %v1615
        %1643 = vmatprep.subr.mxu0 0.0
        %1644 = vmatpush1.msra.mxu0 %v1616
        %1645 = vmatprep.subr.mxu0 0.0
        %1646 = vmatpush1.msra.mxu0 %v1617
        %1647 = vmatprep.subr.mxu0 0.0
        %1648 = vmatpush1.msra.mxu0 %v1618
        %1649 = vmatprep.subr.mxu0 0.0
        %1650 = vmatpush1.msra.mxu0 %v1619
        %1651 = vmatprep.subr.mxu0 0.0
        %1652 = vmatpush1.msra.mxu0 %v1620
        %1653 = vmatprep.subr.mxu0 0.0
        %1654 = vmatpush1.msra.mxu0 %v1621
        %1655 = vmatprep.subr.mxu0 0.0
        %1656 = vmatpush1.msra.mxu0 %v1622
        %1657 = vmatprep.subr.mxu0 0.0
        %1658 = vmatpush1.msra.mxu0 %v1623
        %1659 = vmatprep.subr.mxu0 0.0
        %1660 = vmatpush1.msra.mxu0 %v1624
        %1661 = vmatprep.subr.mxu0 0.0
        %1662 = vmatpush1.msra.mxu0 %v1625
        %1663 = vmatprep.subr.mxu0 0.0
        %1664 = vmatpush1.msra.mxu0 %v1626
        %1665 = vmatprep.subr.mxu0 0.0
        %1666 = vmatpush1.msra.mxu0 %v1627
        %1667 = vmatprep.subr.mxu0 0.0
        %1668 = vmatpush1.msra.mxu0 0.0
        %1669 = vmatprep.subr.mxu0 0.0
        %1670 = vmatpush1.msra.mxu0 0.0
        %1671 = vmatprep.subr.mxu0 0.0
        %1672 = vmatpush1.msra.mxu0 0.0
        %1673 = vmatprep.subr.mxu0 0.0
        %1674 = vmatpush1.msra.mxu0 0.0
        %1675 = vmatprep.subr.mxu0 0.0
        %1676 = vmatpush1.msra.mxu0 0.0
        %1677 = vmatprep.subr.mxu0 0.0
        %1678 = vmatpush1.msra.mxu0 0.0
        %1679 = vmatprep.subr.mxu0 0.0
        %1680 = vmatpush1.msra.mxu0 0.0
        %1681 = vmatprep.subr.mxu0 0.0
        %1682 = vmatpush1.msra.mxu0 0.0
        %1683 = vmatprep.subr.mxu0 0.0
        %1684 = vmatpush1.msra.mxu0 0.0
        %1685 = vmatprep.subr.mxu0 0.0
        %1686 = vmatpush1.msra.mxu0 0.0
        %1687 = vmatprep.subr.mxu0 0.0
        %1688 = vmatpush1.msra.mxu0 0.0
        %1689 = vmatprep.subr.mxu0 0.0
        %1690 = vmatpush1.msra.mxu0 0.0
        %1691 = vmatprep.subr.mxu0 0.0
        %1692 = vmatpush1.msra.mxu0 0.0
        %1693 = vmatprep.subr.mxu0 0.0
        %1694 = vmatpush1.msra.mxu0 0.0
        %1695 = vmatprep.subr.mxu0 0.0
        %1696 = vmatpush1.msra.mxu0 0.0
        %1697 = vmatprep.subr.mxu0 0.0
        %1698 = vmatpush1.msra.mxu0 0.0
        %1699 = vmatprep.mubr.f32.mxu0 0.0
        %1700 = vmatmul.mubr.f32.gmra.mrb[0].mxu0 %v1610
        %v1701 = vpop.f32.mrb[0].mxu0
        %v1702 = vadd.f32 %v1633, %v1701
        %v1703 = vpop.f32.mrb[0].mxu0
        %1704 = vmatprep.mubr.f32.mxu0 0.0
        %1705 = vmatmul.mubr.f32.gmra.mrb[0].mxu0 %v1611
        %v1706 = vpop.f32.mrb[0].mxu0
        %v1707 = vadd.f32 %v1633, %v1706
        %v1708 = vpop.f32.mrb[0].mxu0
        %1709 = vdwg.mxu0
        %v1710 = vmax.f32 %v1702, 0.0
        %v1711 = vmax.f32 %v1707, 0.0
        %v1712 = vmul.f32 %v1710, %v1710
        %v1713 = vmul.f32 %v1711, %v1711
        %1714 = vadd.xlane.f32.xlu0 %v1712
        %v1715 = vpop.xlane.xlu0 %1714
        %1716 = vadd.xlane.f32.xlu0 %v1713
        %v1717 = vpop.xlane.xlu0 %1716
        %v1718 = vld [vmem:[%s6] sm:$0x1]
        %v1720 = vlaneseq
        %v1721 = vshrl.u32 %v1720, 7
        %v1722 = vsub.s32 0, %v1721
        %v1723 = vrot.slane %v1718, %v1722
        %v1725 = vmul.f32 %v1712, %v1723
        %v1726 = vmul.f32 %v1713, %v1723
        %1727 = vadd.xlane.f32.xlu0 %v1725
        %v1728 = vpop.xlane.xlu0 %1727
        %1729 = vadd.xlane.f32.xlu0 %v1726
        %v1730 = vpop.xlane.xlu0 %1729
        %v1731 = vrcp.pop %v1715
        %v1732 = vmul.f32 %v1728, %v1731
        %v1733 = vrcp.pop %v1717
        %v1734 = vmul.f32 %v1730, %v1733
        %vm1735 = vcmask 7168
        %1736 = vst.msk [vmem:[%s295] sm:$0xff] %vm1735, %v1732
        %1737 = vst.msk [vmem:[%s295 + $0x8] sm:$0xff] %vm1735, %v1734
        %s1738 = smul.u32 2, %s19
        %p1739 = scmp.lt.s32.totalorder %s1738, 3
        %s1740 = scalar_select %p1739, %s1738, 3
        %s1741 = smul.addr %s1740, 8
        %s1742 = scalar_lea.vmem %s7, %s1741
        // Predicated region
        $region53: #{actor_forward.1} parent=47 // pred_check
          %p1743 = pneg %p189
        $region54: #{actor_forward.1} parent=47 // pred_check_branch
          %1745 = sbr.rel (%p1743) target = $region56
        $region55: #{actor_forward.1} parent=47 // pred_region
          %s1746 = smul.u32 2, %s19
        $region56: #{actor_forward.1} parent=47 // pred_fallthru
          _
      $region48: #{actor_forward.1} parent=5 // pred_fallthru
        _
      %p1747 = scmp.le.s32.totalorder 2, %s14
      // Predicated region
      $region57: #{actor_forward.1} parent=5 // pred_check
        %p1748 = pneg %p1747
      $region58: #{actor_forward.1} parent=5 // pred_check_branch
        %1750 = sbr.rel (%p1748) target = $region60
      $region59: #{actor_forward.1} parent=5 // pred_region
        %s1751 = ssub.s32 %s14, 2
        // Predicated region
        $region61: #{actor_forward.1} parent=59 // pred_check
          %p1752 = pneg %p195
        $region62: #{actor_forward.1} parent=59 // pred_check_branch
          %1754 = sbr.rel (%p1752) target = $region64
        $region63: #{actor_forward.1} parent=59 // pred_region
          %s1755 = smul.u32 2, %s20
          %p1756 = scmp.lt.s32.totalorder %s1755, 3
          %s1757 = scalar_select %p1756, %s1755, 3
          %s1758 = smul.addr %s1757, 8
          %s1759 = scalar_lea.vmem %s7, %s1758
        $region64: #{actor_forward.1} parent=59 // pred_fallthru
          _
      $region60: #{actor_forward.1} parent=5 // pred_fallthru
        _
    $region6: #{actor_forward.1} parent=1 // loop_footer
      %s18 = sadd.s32 1, %s14
    $region7: #{actor_forward.1} parent=1 // loop_footer_branch
      %13 = sbr.rel target = $region3
    $region8: #{actor_forward.1} parent=1 // loop_exit
      _
    %1760 = vsyncpa [#allocation4], 1
    %s1761 = scalar_lea.sflag [#allocation4], 1
    %1762 = vsyncpa %s1761, 1

</llo_original>
